<compile_context>
chip_gen: v7x
topology: tpu7x:2x2x1
jax: 0.10.0
libtpu: 0.0.40
codegen_flags: <defaults>
</compile_context>

<pallas_src>
import functools

import jax
import jax.numpy as jnp
from jax import lax
from jax.experimental import pallas as pl
from jax.experimental.pallas import tpu as pltpu


# ----------------------------------------------------------------------------
# Plain-JAX glue: sampling / grouping (data-dependent gathers, no clean Pallas
# equivalent -> kept outside the kernel).
# ----------------------------------------------------------------------------
def index_points(points, idx):
    """points: [B, N, C]; idx: [B, ...] -> [B, ..., C]"""
    return jax.vmap(lambda p, i: p[i])(points, idx)


def square_distance(src, dst):
    """src: [B, N, C], dst: [B, M, C] -> [B, N, M] squared distances."""
    d = -2.0 * jnp.einsum("bnc,bmc->bnm", src, dst)
    d = d + jnp.sum(src ** 2, axis=-1)[:, :, None]
    d = d + jnp.sum(dst ** 2, axis=-1)[:, None, :]
    return d


def farthest_point_sample(points, num_points, key):
    """points: [B, N, 3] -> centroid indices [B, num_points] (int32)."""
    B, N, _ = points.shape
    points_f32 = points.astype(jnp.float32)
    batch_idx = jnp.arange(B)

    distance0 = jnp.full((B, N), 1e10, dtype=jnp.float32)
    farthest0 = jax.random.randint(key, (B,), 0, N, dtype=jnp.int32)
    centroids0 = jnp.zeros((B, num_points), dtype=jnp.int32)

    def body(i, carry):
        centroids, distance, farthest = carry
        centroids = centroids.at[:, i].set(farthest)
        centroid = points_f32[batch_idx, farthest][:, None, :]   # [B,1,3]
        dist = jnp.sum((points_f32 - centroid) ** 2, axis=-1)    # [B,N]
        distance = jnp.minimum(distance, dist)
        farthest = jnp.argmax(distance, axis=-1).astype(jnp.int32)
        return centroids, distance, farthest

    centroids, _, _ = lax.fori_loop(
        0, num_points, body, (centroids0, distance0, farthest0))
    return centroids


def query_ball_point(radius, num_sample, xyz, new_xyz):
    """xyz: [B, N, 3], new_xyz: [B, S, 3] -> group indices [B, S, num_sample].
    NOTE: matches the given reference exactly (sentinel index is N-1)."""
    B, N, _ = xyz.shape
    _, S, _ = new_xyz.shape
    sqd = square_distance(new_xyz, xyz)                              # [B,S,N]
    base = jnp.broadcast_to(jnp.arange(N, dtype=jnp.int32), (B, S, N))
    group_idx = jnp.where(sqd > radius ** 2, N - 1, base)
    group_idx = jnp.sort(group_idx, axis=-1)[:, :, :num_sample]
    group_first = group_idx[:, :, :1]
    group_idx = jnp.where(group_idx == N - 1, group_first, group_idx)
    return group_idx


def sample_and_group(num_points, radius, num_samples, xyz, features, key,
                     feat_dtype=None):
    """xyz: [B, N, 3]; features: [B, N, D] or None."""
    B, _, C3 = xyz.shape
    fps_idx = farthest_point_sample(xyz, num_points, key)            # [B,S]
    new_xyz = index_points(xyz, fps_idx)                             # [B,S,3]
    idx = query_ball_point(radius, num_samples, xyz, new_xyz)        # [B,S,K]
    grouped_xyz = index_points(xyz, idx)                             # [B,S,K,3]
    grouped_xyz_norm = grouped_xyz - new_xyz.reshape(B, num_points, 1, C3)
    if feat_dtype is not None:
        grouped_xyz_norm = grouped_xyz_norm.astype(feat_dtype)
    if features is not None:
        grouped_feat = index_points(features, idx)                   # [B,S,K,D]
        if feat_dtype is not None:
            grouped_feat = grouped_feat.astype(feat_dtype)
        new_features = jnp.concatenate([grouped_xyz_norm, grouped_feat], axis=-1)
    else:
        new_features = grouped_xyz_norm
    return new_xyz, new_features


def sample_and_group_all(xyz, features, feat_dtype=None):
    B, N, C3 = xyz.shape
    new_xyz = jnp.zeros((B, 1, C3), dtype=xyz.dtype)
    grouped_xyz = xyz.reshape(B, 1, N, C3)
    if feat_dtype is not None:
        grouped_xyz = grouped_xyz.astype(feat_dtype)
    if features is not None:
        feats = features.reshape(B, 1, N, -1)
        if feat_dtype is not None:
            feats = feats.astype(feat_dtype)
        new_features = jnp.concatenate([grouped_xyz, feats], axis=-1)
    else:
        new_features = grouped_xyz
    return new_xyz, new_features


# ----------------------------------------------------------------------------
# Pallas kernel: stacked 1x1-conv MLP (+ folded BN) + ReLU + max over samples.
# ----------------------------------------------------------------------------
def _round_up(x, m):
    return ((x + m - 1) // m) * m


def _vmem_capacity_bytes():
    try:
        return int(pltpu.get_tpu_info().vmem_capacity_bytes)
    except Exception:
        return 64 * 1024 * 1024   # conservative default (v7x per-TC)


def _vmem_tile_bytes(shape, dtype):
    """Bytes a 2-D array occupies in VMEM, including sublane/128-lane padding."""
    r, c = shape
    itemsize = jnp.dtype(dtype).itemsize
    sublane = 8 * max(1, 4 // itemsize)          # f32 -> 8 rows, bf16 -> 16 rows
    return _round_up(max(r, 1), sublane) * _round_up(max(c, 1), 128) * itemsize


def _choose_tile_g(G, K, c_dims, c_out_pad, budget_bytes, weight_bytes):
    """Pick TG (multiple of 8): lane-padded working-set accounting, resident
    weight footprint subtracted, TG*K row target rather than max-fill."""
    lane = lambda c: _round_up(max(c, 1), 128)
    x_bytes = 2 * K * lane(c_dims[0]) * 2                       # bf16 x tile, 2 buffers
    # live activations during a layer (input + output), f32 upper bound
    inter = max(K * 4 * (lane(ci) + lane(co))
                for ci, co in zip(c_dims[:-1], c_dims[1:]))
    out_bytes = 2 * c_out_pad * 4                               # f32 out tile, 2 buffers
    per_g = x_bytes + inter + out_bytes

    tg_vmem = max(8, (budget_bytes - weight_bytes) // per_g)
    tg_rows = max(8, 4096 // max(K, 1))     # TG*K ~ 4k rows: MXU-fill / overhead target
    tg = min(tg_vmem, tg_rows)

    # prefer >= ~4 grid steps (v7x megacore) if each still feeds >= 1k rows
    tg_steps = _round_up(pl.cdiv(G, 4), 8)
    if tg_steps * K >= 1024:
        tg = min(tg, tg_steps)

    tg = max(8, (tg // 8) * 8)
    return min(tg, _round_up(G, 8))


def _make_mlp_max_kernel(num_layers, num_samples, tile_g, first_layer_fma):
    def kernel(x_ref, *refs):
        # x_ref: [TG*K, C0] bf16; refs = (w0, b0, w1, b1, ..., out_ref)
        out_ref = refs[-1]
        wbs = refs[:-1]
        h = x_ref[...]                                  # bf16 [TG*K, C0]
        for l in range(num_layers):
            w = wbs[2 * l][...]                         # [C_in, C_out]
            b = wbs[2 * l + 1][...]                     # f32 [1, C_out]
            if l == 0 and first_layer_fma:
                # Tiny contraction (C_in = 3+D): VPU broadcast-FMAs, skip the MXU.
                acc = jnp.broadcast_to(b, (h.shape[0], w.shape[-1]))
                for c in range(h.shape[-1]):
                    acc = acc + (h[:, c:c + 1].astype(jnp.float32)
                                 * w[c:c + 1, :].astype(jnp.float32))
            else:
                acc = jnp.dot(h, w, preferred_element_type=jnp.float32) + b
            acc = jnp.maximum(acc, 0.0)                 # ReLU (f32)
            h = acc.astype(jnp.bfloat16) if l + 1 < num_layers else acc
        # max over the K samples: [TG*K, C_last] -> [TG, K, C_last] -> [TG, C_last]
        c_last = h.shape[-1]
        out_ref[...] = jnp.max(h.reshape(tile_g, num_samples, c_last), axis=1)
    return kernel


def mlp_max_pallas(x, folded_params, *, tile_g=None):
    """x: [G, K, C0]; folded_params: list of (W [Cin,Cout], b [1,Cout]).
    Returns [G, C_last] float32 = max over K of relu-MLP per point."""
    G, K, C0 = x.shape
    L = len(folded_params)
    c_out = int(folded_params[-1][0].shape[1])
    c_out_pad = _round_up(c_out, 128)                   # lane-dense output store

    first_layer_fma = C0 <= 16                          # 3+D channels -> VPU path

    # Pad last layer channels to c_out_pad (zeros -> padded lanes stay 0).
    params = list(folded_params)
    if c_out_pad != c_out:
        w_last, b_last = params[-1]
        w_last = jnp.pad(w_last, ((0, 0), (0, c_out_pad - c_out)))
        b_last = jnp.pad(b_last, ((0, 0), (0, c_out_pad - c_out)))
        params[-1] = (w_last, b_last)

    flat = []
    c_dims = [C0]
    for l, (w, b) in enumerate(params):
        w_dtype = jnp.float32 if (l == 0 and first_layer_fma) else jnp.bfloat16
        flat.append(w.astype(w_dtype))
        flat.append(b.astype(jnp.float32).reshape(1, -1))
        c_dims.append(int(w.shape[1]))

    vmem_cap = _vmem_capacity_bytes()
    # capacity minus ~8 MiB Mosaic headroom, capped at 100 MiB on 128 MiB parts
    vmem_limit = int(max(24 << 20, min(vmem_cap - (8 << 20), 100 << 20)))
    # resident weights counted x2 so the fit is safe even without Buffered(1)
    weight_bytes = 2 * sum(_vmem_tile_bytes(a.shape, a.dtype) for a in flat)
    if tile_g is None:
        tile_g = _choose_tile_g(G, K, c_dims, c_out_pad,
                                int(vmem_limit * 0.85), weight_bytes)

    # No jnp.pad round trip: cdiv grid; OOB tail rows only affect masked /
    # discarded output rows.  x is already bf16 when the grouping emitted bf16.
    x2 = x.reshape(G * K, C0).astype(jnp.bfloat16)
    num_tiles = pl.cdiv(G, tile_g)

    x_spec = pl.BlockSpec((tile_g * K, C0), lambda i: (i, 0))
    out_spec = pl.BlockSpec((tile_g, c_out_pad), lambda i: (i, 0))

    flops = 2 * G * K * sum(ci * co for ci, co in zip(c_dims[:-1], c_dims[1:]))
    bytes_accessed = (G * K * C0 * 2
                      + sum(int(a.size) * a.dtype.itemsize for a in flat)
                      + G * c_out_pad * 4)
    cost = pl.CostEstimate(flops=int(flops), transcendentals=0,
                           bytes_accessed=int(bytes_accessed))

    def run(single_buffer_weights):
        in_specs = [x_spec]
        for a in flat:
            if single_buffer_weights:
                # constant index_map -> fetched once; one buffer saves VMEM
                in_specs.append(pl.BlockSpec(a.shape, lambda i: (0, 0),
                                             pipeline_mode=pl.Buffered(1)))
            else:
                in_specs.append(pl.BlockSpec(a.shape, lambda i: (0, 0)))
        return pl.pallas_call(
            _make_mlp_max_kernel(L, K, tile_g, first_layer_fma),
            out_shape=jax.ShapeDtypeStruct((G, c_out_pad), jnp.float32),
            grid=(num_tiles,),
            in_specs=in_specs,
            out_specs=out_spec,
            compiler_params=pltpu.CompilerParams(
                dimension_semantics=("parallel",),      # shards G over v7x TCs
                vmem_limit_bytes=vmem_limit),
            cost_estimate=cost,
        )(x2, *flat)

    try:
        out = run(True)
    except Exception:
        # pl.Buffered(1) not supported by this jax/Mosaic -> default buffering
        out = run(False)
    return out[:, :c_out]


# ----------------------------------------------------------------------------
# Module: parameter init + forward
# ----------------------------------------------------------------------------
def init_params(key, in_channels, mlp):
    """Deterministic Conv2d(1x1) + BatchNorm2d parameters, BN folded into conv."""
    params = []
    prev = in_channels
    eps = 1e-5
    for out_ch in mlp:
        k_w, k_b, k_g, k_be, key = jax.random.split(key, 5)
        w = 0.1 * jax.random.normal(k_w, (out_ch, prev), dtype=jnp.float32)
        b = 0.1 * jax.random.normal(k_b, (out_ch,), dtype=jnp.float32)
        gamma = 1.0 + 0.05 * jax.random.normal(k_g, (out_ch,), dtype=jnp.float32)
        beta = 0.05 * jax.random.normal(k_be, (out_ch,), dtype=jnp.float32)
        run_mean = jnp.zeros((out_ch,), jnp.float32)
        run_var = jnp.ones((out_ch,), jnp.float32)
        scale = gamma / jnp.sqrt(run_var + eps)
        shift = beta - run_mean * scale
        w_fold = (w * scale[:, None]).T                 # [prev, out_ch]
        b_fold = (b * scale + shift)[None, :]           # [1, out_ch]
        params.append((w_fold, b_fold))
        prev = out_ch
    return params


def pointnet_set_abstraction_forward(point_coordinates, features, params,
                                     num_points, radius, num_samples,
                                     group_all, fps_key):
    """point_coordinates: [B, 3, N]; features: [B, D, N] or None.
    Returns (new_point_coordinates [B, 3, S], new_features [B, mlp[-1], S])."""
    xyz = jnp.transpose(point_coordinates, (0, 2, 1))     # [B, N, 3]
    feat = None if features is None else jnp.transpose(features, (0, 2, 1))

    # Grouped features are emitted directly in bf16: no extra full-slab cast.
    if group_all:
        new_xyz, new_feat = sample_and_group_all(xyz, feat, feat_dtype=jnp.bfloat16)
    else:
        new_xyz, new_feat = sample_and_group(
            num_points, radius, num_samples, xyz, feat, fps_key,
            feat_dtype=jnp.bfloat16)

    B, S, K, C = new_feat.shape
    x = new_feat.reshape(B * S, K, C)                       # [G, K, C]

    # TODO(synk): for group_all (G=B tiny, K=N huge) a K-split grid with a
    #             running-max accumulator would keep both v7x TCs busy.
    out = mlp_max_pallas(x, params)                         # [G, C_last] f32
    c_last = out.shape[-1]
    new_features = jnp.transpose(out.reshape(B, S, c_last), (0, 2, 1))  # [B,C,S]
    new_xyz_out = jnp.transpose(new_xyz, (0, 2, 1))                     # [B,3,S]
    return new_xyz_out, new_features


# ----------------------------------------------------------------------------
if __name__ == "__main__":
    # Small, module-consistent shapes.
    B, N, D = 2, 32, 4            # batch, input points, extra feature channels
    num_points, radius, num_samples = 8, 0.4, 8
    in_channels = 3 + D           # grouped coords-norm (3) + features (D)
    mlp = [16, 32]
    group_all = False

    root = jax.random.PRNGKey(0)
    k_xyz, k_feat, k_fps, k_params = jax.random.split(root, 4)

    point_coordinates = jax.random.normal(k_xyz, (B, 3, N), dtype=jnp.float32)
    features = jax.random.normal(k_feat, (B, D, N), dtype=jnp.float32)

    params = init_params(k_params, in_channels, mlp)

    fwd = functools.partial(
        pointnet_set_abstraction_forward,
        num_points=num_points, radius=radius, num_samples=num_samples,
        group_all=group_all, fps_key=k_fps)

    new_xyz, new_features = fwd(point_coordinates, features, params=params)
    jax.block_until_ready((new_xyz, new_features))

    assert new_xyz.shape == (B, 3, num_points)
    assert new_features.shape == (B, mlp[-1], num_points)
    assert bool(jnp.all(jnp.isfinite(new_features)))
    print("KERNEL_OK")
</pallas_src>

<mosaic_0001>
module attributes {stable_mosaic.version = 11 : i64} {
  func.func @kernel(%arg0: i32, %arg1: memref<128x7xbf16, #tpu.memory_space<vmem>>, %arg2: memref<7x16xf32, #tpu.memory_space<vmem>>, %arg3: memref<1x16xf32, #tpu.memory_space<vmem>>, %arg4: memref<16x128xbf16, #tpu.memory_space<vmem>>, %arg5: memref<1x128xf32, #tpu.memory_space<vmem>>, %arg6: memref<16x128xf32, #tpu.memory_space<vmem>>) attributes {dimension_semantics = [#tpu.dimension_semantics<parallel>], iteration_bounds = array<i64: 1>, scalar_prefetch = 0 : i64, scratch_operands = 0 : i64, tpu.core_type = #tpu.core_type<tc>, window_params = [{transform_indices = @transform_0, window_bounds = array<i64: 128, 7>}, {pipeline_mode = #tpu.pipeline_mode<synchronous>, transform_indices = @transform_1, window_bounds = array<i64: 7, 16>}, {pipeline_mode = #tpu.pipeline_mode<synchronous>, transform_indices = @transform_2, window_bounds = array<i64: 1, 16>}, {pipeline_mode = #tpu.pipeline_mode<synchronous>, transform_indices = @transform_3, window_bounds = array<i64: 16, 128>}, {pipeline_mode = #tpu.pipeline_mode<synchronous>, transform_indices = @transform_4, window_bounds = array<i64: 1, 128>}, {transform_indices = @transform_5, window_bounds = array<i64: 16, 128>}]} {
    %c0 = arith.constant 0 : index
    %c0_0 = arith.constant 0 : index
    %0 = vector.load %arg1[%c0, %c0_0] : memref<128x7xbf16, #tpu.memory_space<vmem>>, vector<128x7xbf16>
    %c0_1 = arith.constant 0 : index
    %c0_2 = arith.constant 0 : index
    %1 = vector.load %arg2[%c0_1, %c0_2] : memref<7x16xf32, #tpu.memory_space<vmem>>, vector<7x16xf32>
    %c0_3 = arith.constant 0 : index
    %c0_4 = arith.constant 0 : index
    %2 = vector.load %arg3[%c0_3, %c0_4] : memref<1x16xf32, #tpu.memory_space<vmem>>, vector<1x16xf32>
    %3 = vector.shape_cast %2 : vector<1x16xf32> to vector<1x16xf32>
    %4 = vector.broadcast %3 : vector<1x16xf32> to vector<128x16xf32>
    %5 = vector.extract_strided_slice %0 {offsets = [0, 0], sizes = [128, 1], strides = [1, 1]} : vector<128x7xbf16> to vector<128x1xbf16>
    %6 = arith.extf %5 : vector<128x1xbf16> to vector<128x1xf32>
    %7 = vector.extract_strided_slice %1 {offsets = [0, 0], sizes = [1, 16], strides = [1, 1]} : vector<7x16xf32> to vector<1x16xf32>
    %8 = vector.broadcast %6 : vector<128x1xf32> to vector<128x16xf32>
    %9 = vector.broadcast %7 : vector<1x16xf32> to vector<128x16xf32>
    %10 = arith.mulf %8, %9 : vector<128x16xf32>
    %11 = arith.addf %4, %10 : vector<128x16xf32>
    %12 = vector.extract_strided_slice %0 {offsets = [0, 1], sizes = [128, 1], strides = [1, 1]} : vector<128x7xbf16> to vector<128x1xbf16>
    %13 = arith.extf %12 : vector<128x1xbf16> to vector<128x1xf32>
    %14 = vector.extract_strided_slice %1 {offsets = [1, 0], sizes = [1, 16], strides = [1, 1]} : vector<7x16xf32> to vector<1x16xf32>
    %15 = vector.broadcast %13 : vector<128x1xf32> to vector<128x16xf32>
    %16 = vector.broadcast %14 : vector<1x16xf32> to vector<128x16xf32>
    %17 = arith.mulf %15, %16 : vector<128x16xf32>
    %18 = arith.addf %11, %17 : vector<128x16xf32>
    %19 = vector.extract_strided_slice %0 {offsets = [0, 2], sizes = [128, 1], strides = [1, 1]} : vector<128x7xbf16> to vector<128x1xbf16>
    %20 = arith.extf %19 : vector<128x1xbf16> to vector<128x1xf32>
    %21 = vector.extract_strided_slice %1 {offsets = [2, 0], sizes = [1, 16], strides = [1, 1]} : vector<7x16xf32> to vector<1x16xf32>
    %22 = vector.broadcast %20 : vector<128x1xf32> to vector<128x16xf32>
    %23 = vector.broadcast %21 : vector<1x16xf32> to vector<128x16xf32>
    %24 = arith.mulf %22, %23 : vector<128x16xf32>
    %25 = arith.addf %18, %24 : vector<128x16xf32>
    %26 = vector.extract_strided_slice %0 {offsets = [0, 3], sizes = [128, 1], strides = [1, 1]} : vector<128x7xbf16> to vector<128x1xbf16>
    %27 = arith.extf %26 : vector<128x1xbf16> to vector<128x1xf32>
    %28 = vector.extract_strided_slice %1 {offsets = [3, 0], sizes = [1, 16], strides = [1, 1]} : vector<7x16xf32> to vector<1x16xf32>
    %29 = vector.broadcast %27 : vector<128x1xf32> to vector<128x16xf32>
    %30 = vector.broadcast %28 : vector<1x16xf32> to vector<128x16xf32>
    %31 = arith.mulf %29, %30 : vector<128x16xf32>
    %32 = arith.addf %25, %31 : vector<128x16xf32>
    %33 = vector.extract_strided_slice %0 {offsets = [0, 4], sizes = [128, 1], strides = [1, 1]} : vector<128x7xbf16> to vector<128x1xbf16>
    %34 = arith.extf %33 : vector<128x1xbf16> to vector<128x1xf32>
    %35 = vector.extract_strided_slice %1 {offsets = [4, 0], sizes = [1, 16], strides = [1, 1]} : vector<7x16xf32> to vector<1x16xf32>
    %36 = vector.broadcast %34 : vector<128x1xf32> to vector<128x16xf32>
    %37 = vector.broadcast %35 : vector<1x16xf32> to vector<128x16xf32>
    %38 = arith.mulf %36, %37 : vector<128x16xf32>
    %39 = arith.addf %32, %38 : vector<128x16xf32>
    %40 = vector.extract_strided_slice %0 {offsets = [0, 5], sizes = [128, 1], strides = [1, 1]} : vector<128x7xbf16> to vector<128x1xbf16>
    %41 = arith.extf %40 : vector<128x1xbf16> to vector<128x1xf32>
    %42 = vector.extract_strided_slice %1 {offsets = [5, 0], sizes = [1, 16], strides = [1, 1]} : vector<7x16xf32> to vector<1x16xf32>
    %43 = vector.broadcast %41 : vector<128x1xf32> to vector<128x16xf32>
    %44 = vector.broadcast %42 : vector<1x16xf32> to vector<128x16xf32>
    %45 = arith.mulf %43, %44 : vector<128x16xf32>
    %46 = arith.addf %39, %45 : vector<128x16xf32>
    %47 = vector.extract_strided_slice %0 {offsets = [0, 6], sizes = [128, 1], strides = [1, 1]} : vector<128x7xbf16> to vector<128x1xbf16>
    %48 = arith.extf %47 : vector<128x1xbf16> to vector<128x1xf32>
    %49 = vector.extract_strided_slice %1 {offsets = [6, 0], sizes = [1, 16], strides = [1, 1]} : vector<7x16xf32> to vector<1x16xf32>
    %50 = vector.broadcast %48 : vector<128x1xf32> to vector<128x16xf32>
    %51 = vector.broadcast %49 : vector<1x16xf32> to vector<128x16xf32>
    %52 = arith.mulf %50, %51 : vector<128x16xf32>
    %53 = arith.addf %46, %52 : vector<128x16xf32>
    %cst = arith.constant 0.000000e+00 : f32
    %54 = vector.broadcast %cst : f32 to vector<128x16xf32>
    %55 = arith.maximumf %53, %54 : vector<128x16xf32>
    %56 = arith.truncf %55 : vector<128x16xf32> to vector<128x16xbf16>
    %c0_5 = arith.constant 0 : index
    %c0_6 = arith.constant 0 : index
    %57 = vector.load %arg4[%c0_5, %c0_6] : memref<16x128xbf16, #tpu.memory_space<vmem>>, vector<16x128xbf16>
    %c0_7 = arith.constant 0 : index
    %c0_8 = arith.constant 0 : index
    %58 = vector.load %arg5[%c0_7, %c0_8] : memref<1x128xf32, #tpu.memory_space<vmem>>, vector<1x128xf32>
    %cst_9 = arith.constant dense<0.000000e+00> : vector<128x128xf32>
    %59 = tpu.matmul %56, %57, %cst_9 {dimension_numbers = #tpu.dot_dimension_numbers<[1], [0], [0], [1], [0, 0, 1, 1], [], []>} : vector<128x16xbf16>, vector<16x128xbf16>, vector<128x128xf32> -> vector<128x128xf32>
    %60 = vector.broadcast %58 : vector<1x128xf32> to vector<128x128xf32>
    %61 = arith.addf %59, %60 : vector<128x128xf32>
    %cst_10 = arith.constant 0.000000e+00 : f32
    %62 = vector.broadcast %cst_10 : f32 to vector<128x128xf32>
    %63 = arith.maximumf %61, %62 : vector<128x128xf32>
    %64 = vector.shape_cast %63 : vector<128x128xf32> to vector<16x8x128xf32>
    %cst_11 = arith.constant dense<0xFF800000> : vector<16x128xf32>
    %65 = vector.multi_reduction <maximumf>, %64, %cst_11 [1] : vector<16x8x128xf32> to vector<16x128xf32>
    %c0_12 = arith.constant 0 : index
    %c0_13 = arith.constant 0 : index
    %66 = vector.load %arg6[%c0_12, %c0_13] : memref<16x128xf32, #tpu.memory_space<vmem>>, vector<16x128xf32>
    tpu.vector_store %arg6[%c0_12, %c0_13], %65 {strides = array<i32>} : memref<16x128xf32, #tpu.memory_space<vmem>>, vector<16x128xf32>,
    return
  }
  func.func @transform_0(%arg0: i32) -> (i32, i32) {
    %c0_i32 = arith.constant 0 : i32
    %c0_i32_0 = arith.constant 0 : i32
    return %arg0, %c0_i32 : i32, i32
  }
  func.func @transform_1(%arg0: i32) -> (i32, i32) {
    %c0_i32 = arith.constant 0 : i32
    %c0_i32_0 = arith.constant 0 : i32
    %c0_i32_1 = arith.constant 0 : i32
    return %c0_i32, %c0_i32_0 : i32, i32
  }
  func.func @transform_2(%arg0: i32) -> (i32, i32) {
    %c0_i32 = arith.constant 0 : i32
    %c0_i32_0 = arith.constant 0 : i32
    %c0_i32_1 = arith.constant 0 : i32
    return %c0_i32, %c0_i32_0 : i32, i32
  }
  func.func @transform_3(%arg0: i32) -> (i32, i32) {
    %c0_i32 = arith.constant 0 : i32
    %c0_i32_0 = arith.constant 0 : i32
    %c0_i32_1 = arith.constant 0 : i32
    return %c0_i32, %c0_i32_0 : i32, i32
  }
  func.func @transform_4(%arg0: i32) -> (i32, i32) {
    %c0_i32 = arith.constant 0 : i32
    %c0_i32_0 = arith.constant 0 : i32
    %c0_i32_1 = arith.constant 0 : i32
    return %c0_i32, %c0_i32_0 : i32, i32
  }
  func.func @transform_5(%arg0: i32) -> (i32, i32) {
    %c0_i32 = arith.constant 0 : i32
    %c0_i32_0 = arith.constant 0 : i32
    return %arg0, %c0_i32 : i32, i32
  }
}

module attributes {stable_mosaic.version = 11 : i64} {
  func.func @kernel(%arg0: i32, %arg1: memref<128x7xbf16, #tpu.memory_space<vmem>>, %arg2: memref<7x16xf32, #tpu.memory_space<vmem>>, %arg3: memref<1x16xf32, #tpu.memory_space<vmem>>, %arg4: memref<16x128xbf16, #tpu.memory_space<vmem>>, %arg5: memref<1x128xf32, #tpu.memory_space<vmem>>, %arg6: memref<16x128xf32, #tpu.memory_space<vmem>>) attributes {dimension_semantics = [#tpu.dimension_semantics<parallel>], iteration_bounds = array<i64: 1>, scalar_prefetch = 0 : i64, scratch_operands = 0 : i64, tpu.core_type = #tpu.core_type<tc>, window_params = [{transform_indices = @transform_0, window_bounds = array<i64: 128, 7>}, {pipeline_mode = #tpu.pipeline_mode<synchronous>, transform_indices = @transform_1, window_bounds = array<i64: 7, 16>}, {pipeline_mode = #tpu.pipeline_mode<synchronous>, transform_indices = @transform_2, window_bounds = array<i64: 1, 16>}, {pipeline_mode = #tpu.pipeline_mode<synchronous>, transform_indices = @transform_3, window_bounds = array<i64: 16, 128>}, {pipeline_mode = #tpu.pipeline_mode<synchronous>, transform_indices = @transform_4, window_bounds = array<i64: 1, 128>}, {transform_indices = @transform_5, window_bounds = array<i64: 16, 128>}]} {
    %c0 = arith.constant 0 : index
    %c0_0 = arith.constant 0 : index
    %0 = vector.load %arg1[%c0, %c0_0] : memref<128x7xbf16, #tpu.memory_space<vmem>>, vector<128x7xbf16>
    %c0_1 = arith.constant 0 : index
    %c0_2 = arith.constant 0 : index
    %1 = vector.load %arg2[%c0_1, %c0_2] : memref<7x16xf32, #tpu.memory_space<vmem>>, vector<7x16xf32>
    %c0_3 = arith.constant 0 : index
    %c0_4 = arith.constant 0 : index
    %2 = vector.load %arg3[%c0_3, %c0_4] : memref<1x16xf32, #tpu.memory_space<vmem>>, vector<1x16xf32>
    %3 = vector.shape_cast %2 : vector<1x16xf32> to vector<1x16xf32>
    %4 = vector.broadcast %3 : vector<1x16xf32> to vector<128x16xf32>
    %5 = vector.extract_strided_slice %0 {offsets = [0, 0], sizes = [128, 1], strides = [1, 1]} : vector<128x7xbf16> to vector<128x1xbf16>
    %6 = arith.extf %5 : vector<128x1xbf16> to vector<128x1xf32>
    %7 = vector.extract_strided_slice %1 {offsets = [0, 0], sizes = [1, 16], strides = [1, 1]} : vector<7x16xf32> to vector<1x16xf32>
    %8 = vector.broadcast %6 : vector<128x1xf32> to vector<128x16xf32>
    %9 = vector.broadcast %7 : vector<1x16xf32> to vector<128x16xf32>
    %10 = arith.mulf %8, %9 : vector<128x16xf32>
    %11 = arith.addf %4, %10 : vector<128x16xf32>
    %12 = vector.extract_strided_slice %0 {offsets = [0, 1], sizes = [128, 1], strides = [1, 1]} : vector<128x7xbf16> to vector<128x1xbf16>
    %13 = arith.extf %12 : vector<128x1xbf16> to vector<128x1xf32>
    %14 = vector.extract_strided_slice %1 {offsets = [1, 0], sizes = [1, 16], strides = [1, 1]} : vector<7x16xf32> to vector<1x16xf32>
    %15 = vector.broadcast %13 : vector<128x1xf32> to vector<128x16xf32>
    %16 = vector.broadcast %14 : vector<1x16xf32> to vector<128x16xf32>
    %17 = arith.mulf %15, %16 : vector<128x16xf32>
    %18 = arith.addf %11, %17 : vector<128x16xf32>
    %19 = vector.extract_strided_slice %0 {offsets = [0, 2], sizes = [128, 1], strides = [1, 1]} : vector<128x7xbf16> to vector<128x1xbf16>
    %20 = arith.extf %19 : vector<128x1xbf16> to vector<128x1xf32>
    %21 = vector.extract_strided_slice %1 {offsets = [2, 0], sizes = [1, 16], strides = [1, 1]} : vector<7x16xf32> to vector<1x16xf32>
    %22 = vector.broadcast %20 : vector<128x1xf32> to vector<128x16xf32>
    %23 = vector.broadcast %21 : vector<1x16xf32> to vector<128x16xf32>
    %24 = arith.mulf %22, %23 : vector<128x16xf32>
    %25 = arith.addf %18, %24 : vector<128x16xf32>
    %26 = vector.extract_strided_slice %0 {offsets = [0, 3], sizes = [128, 1], strides = [1, 1]} : vector<128x7xbf16> to vector<128x1xbf16>
    %27 = arith.extf %26 : vector<128x1xbf16> to vector<128x1xf32>
    %28 = vector.extract_strided_slice %1 {offsets = [3, 0], sizes = [1, 16], strides = [1, 1]} : vector<7x16xf32> to vector<1x16xf32>
    %29 = vector.broadcast %27 : vector<128x1xf32> to vector<128x16xf32>
    %30 = vector.broadcast %28 : vector<1x16xf32> to vector<128x16xf32>
    %31 = arith.mulf %29, %30 : vector<128x16xf32>
    %32 = arith.addf %25, %31 : vector<128x16xf32>
    %33 = vector.extract_strided_slice %0 {offsets = [0, 4], sizes = [128, 1], strides = [1, 1]} : vector<128x7xbf16> to vector<128x1xbf16>
    %34 = arith.extf %33 : vector<128x1xbf16> to vector<128x1xf32>
    %35 = vector.extract_strided_slice %1 {offsets = [4, 0], sizes = [1, 16], strides = [1, 1]} : vector<7x16xf32> to vector<1x16xf32>
    %36 = vector.broadcast %34 : vector<128x1xf32> to vector<128x16xf32>
    %37 = vector.broadcast %35 : vector<1x16xf32> to vector<128x16xf32>
    %38 = arith.mulf %36, %37 : vector<128x16xf32>
    %39 = arith.addf %32, %38 : vector<128x16xf32>
    %40 = vector.extract_strided_slice %0 {offsets = [0, 5], sizes = [128, 1], strides = [1, 1]} : vector<128x7xbf16> to vector<128x1xbf16>
    %41 = arith.extf %40 : vector<128x1xbf16> to vector<128x1xf32>
    %42 = vector.extract_strided_slice %1 {offsets = [5, 0], sizes = [1, 16], strides = [1, 1]} : vector<7x16xf32> to vector<1x16xf32>
    %43 = vector.broadcast %41 : vector<128x1xf32> to vector<128x16xf32>
    %44 = vector.broadcast %42 : vector<1x16xf32> to vector<128x16xf32>
    %45 = arith.mulf %43, %44 : vector<128x16xf32>
    %46 = arith.addf %39, %45 : vector<128x16xf32>
    %47 = vector.extract_strided_slice %0 {offsets = [0, 6], sizes = [128, 1], strides = [1, 1]} : vector<128x7xbf16> to vector<128x1xbf16>
    %48 = arith.extf %47 : vector<128x1xbf16> to vector<128x1xf32>
    %49 = vector.extract_strided_slice %1 {offsets = [6, 0], sizes = [1, 16], strides = [1, 1]} : vector<7x16xf32> to vector<1x16xf32>
    %50 = vector.broadcast %48 : vector<128x1xf32> to vector<128x16xf32>
    %51 = vector.broadcast %49 : vector<1x16xf32> to vector<128x16xf32>
    %52 = arith.mulf %50, %51 : vector<128x16xf32>
    %53 = arith.addf %46, %52 : vector<128x16xf32>
    %cst = arith.constant 0.000000e+00 : f32
    %54 = vector.broadcast %cst : f32 to vector<128x16xf32>
    %55 = arith.maximumf %53, %54 : vector<128x16xf32>
    %56 = arith.truncf %55 : vector<128x16xf32> to vector<128x16xbf16>
    %c0_5 = arith.constant 0 : index
    %c0_6 = arith.constant 0 : index
    %57 = vector.load %arg4[%c0_5, %c0_6] : memref<16x128xbf16, #tpu.memory_space<vmem>>, vector<16x128xbf16>
    %c0_7 = arith.constant 0 : index
    %c0_8 = arith.constant 0 : index
    %58 = vector.load %arg5[%c0_7, %c0_8] : memref<1x128xf32, #tpu.memory_space<vmem>>, vector<1x128xf32>
    %cst_9 = arith.constant dense<0.000000e+00> : vector<128x128xf32>
    %59 = tpu.matmul %56, %57, %cst_9 {dimension_numbers = #tpu.dot_dimension_numbers<[1], [0], [0], [1], [0, 0, 1, 1], [], []>} : vector<128x16xbf16>, vector<16x128xbf16>, vector<128x128xf32> -> vector<128x128xf32>
    %60 = vector.broadcast %58 : vector<1x128xf32> to vector<128x128xf32>
    %61 = arith.addf %59, %60 : vector<128x128xf32>
    %cst_10 = arith.constant 0.000000e+00 : f32
    %62 = vector.broadcast %cst_10 : f32 to vector<128x128xf32>
    %63 = arith.maximumf %61, %62 : vector<128x128xf32>
    %64 = vector.shape_cast %63 : vector<128x128xf32> to vector<16x8x128xf32>
    %cst_11 = arith.constant dense<0xFF800000> : vector<16x128xf32>
    %65 = vector.multi_reduction <maximumf>, %64, %cst_11 [1] : vector<16x8x128xf32> to vector<16x128xf32>
    %c0_12 = arith.constant 0 : index
    %c0_13 = arith.constant 0 : index
    %66 = vector.load %arg6[%c0_12, %c0_13] : memref<16x128xf32, #tpu.memory_space<vmem>>, vector<16x128xf32>
    tpu.vector_store %arg6[%c0_12, %c0_13], %65 {strides = array<i32>} : memref<16x128xf32, #tpu.memory_space<vmem>>, vector<16x128xf32>,
    return
  }
  func.func @transform_0(%arg0: i32) -> (i32, i32) {
    %c0_i32 = arith.constant 0 : i32
    %c0_i32_0 = arith.constant 0 : i32
    return %arg0, %c0_i32 : i32, i32
  }
  func.func @transform_1(%arg0: i32) -> (i32, i32) {
    %c0_i32 = arith.constant 0 : i32
    %c0_i32_0 = arith.constant 0 : i32
    %c0_i32_1 = arith.constant 0 : i32
    return %c0_i32, %c0_i32_0 : i32, i32
  }
  func.func @transform_2(%arg0: i32) -> (i32, i32) {
    %c0_i32 = arith.constant 0 : i32
    %c0_i32_0 = arith.constant 0 : i32
    %c0_i32_1 = arith.constant 0 : i32
    return %c0_i32, %c0_i32_0 : i32, i32
  }
  func.func @transform_3(%arg0: i32) -> (i32, i32) {
    %c0_i32 = arith.constant 0 : i32
    %c0_i32_0 = arith.constant 0 : i32
    %c0_i32_1 = arith.constant 0 : i32
    return %c0_i32, %c0_i32_0 : i32, i32
  }
  func.func @transform_4(%arg0: i32) -> (i32, i32) {
    %c0_i32 = arith.constant 0 : i32
    %c0_i32_0 = arith.constant 0 : i32
    %c0_i32_1 = arith.constant 0 : i32
    return %c0_i32, %c0_i32_0 : i32, i32
  }
  func.func @transform_5(%arg0: i32) -> (i32, i32) {
    %c0_i32 = arith.constant 0 : i32
    %c0_i32_0 = arith.constant 0 : i32
    return %arg0, %c0_i32 : i32, i32
  }
}

</mosaic_0001>

<llo_original>
// kernel: tpu_custom_call.1
$region0: #{tpu_custom_call.1}
  #allocation0 [shape = 'u32[]', space=smem, size = 0x4, offset = 0x4, fixed_abs, tag = 'smem constant byte address 0x4 - core index']
  #allocation1 [shape = 'u32[144,128]{1,0:T(1,128)}', space=vmem, size = 0x12000, scoped, tag = 'internal scratch']
  %s0 = inlined_call_operand.vmem [shape: bf16[128,7], index: 0, kind: input, shape index: {}]
  %s1 = inlined_call_operand.vmem [shape: f32[7,16], index: 1, kind: input, shape index: {}]
  %s2 = inlined_call_operand.vmem [shape: f32[1,16], index: 2, kind: input, shape index: {}]
  %s3 = inlined_call_operand.vmem [shape: bf16[16,128], index: 3, kind: input, shape index: {}]
  %s4 = inlined_call_operand.vmem [shape: f32[1,128], index: 4, kind: input, shape index: {}]
  %s5 = inlined_call_operand.hbm [shape: f32[16,128], index: 5, kind: output, shape index: {}]
  %s6 = sld [smem:[#allocation0]]
  $region30: #{tpu_custom_call.1} parent=0
    _
  %s8 = ssub.s32 1, %s6
  %s9 = scalar_select 0, %s8, %s6
  $region1: #{tpu_custom_call.1} parent=0
    #allocation2 [shape = 'u8[8192]{0}', space=vmem, size = 0x2000, scoped, tag = 'output window, operand 0, single buffered']
    #allocation3 [shape = 's32[1]{0}', space=sflag, size = 0x4, scoped, tag = 'scoped memory for tpu_custom_call.1']
    %10 = vsyncpa [#allocation3], 0
    // Predicated region
    $region2: #{tpu_custom_call.1} parent=1 // pred_check
      _
    $region3: #{tpu_custom_call.1} parent=1 // pred_check_branch
      %12 = sbr.rel (0) target = $region5
    $region4: #{tpu_custom_call.1} parent=1 // pred_region
      _
    $region5: #{tpu_custom_call.1} parent=1 // pred_fallthru
      _
    // Predicated region
    $region6: #{tpu_custom_call.1} parent=1 // pred_check
      _
    $region7: #{tpu_custom_call.1} parent=1 // pred_check_branch
      %14 = sbr.rel (0) target = $region9
    $region8: #{tpu_custom_call.1} parent=1 // pred_region
      _
    $region9: #{tpu_custom_call.1} parent=1 // pred_fallthru
      _
    // Predicated region
    $region10: #{tpu_custom_call.1} parent=1 // pred_check
      _
    $region11: #{tpu_custom_call.1} parent=1 // pred_check_branch
      %16 = sbr.rel (0) target = $region13
    $region12: #{tpu_custom_call.1} parent=1 // pred_region
      _
    $region13: #{tpu_custom_call.1} parent=1 // pred_fallthru
      _
    // Predicated region
    $region14: #{tpu_custom_call.1} parent=1 // pred_check
      _
    $region15: #{tpu_custom_call.1} parent=1 // pred_check_branch
      %18 = sbr.rel (0) target = $region17
    $region16: #{tpu_custom_call.1} parent=1 // pred_region
      _
    $region17: #{tpu_custom_call.1} parent=1 // pred_fallthru
      _
    // Predicated region
    $region18: #{tpu_custom_call.1} parent=1 // pred_check
      _
    $region19: #{tpu_custom_call.1} parent=1 // pred_check_branch
      %20 = sbr.rel (0) target = $region21
    $region20: #{tpu_custom_call.1} parent=1 // pred_region
      _
    $region21: #{tpu_custom_call.1} parent=1 // pred_fallthru
      _
    %v22 = vld [vmem:[%s0] sm:$0xf]
    %v23 = vld [vmem:[%s0 + $0x4] sm:$0xf]
    %v24 = vld [vmem:[%s0 + $0x8] sm:$0xf]
    %v25 = vld [vmem:[%s0 + $0xc] sm:$0xf]
    %v26 = vld [vmem:[%s0 + $0x10] sm:$0xf]
    %v27 = vld [vmem:[%s0 + $0x14] sm:$0xf]
    %v28 = vld [vmem:[%s0 + $0x18] sm:$0xf]
    %v29 = vld [vmem:[%s0 + $0x1c] sm:$0xf]
    %v30 = vld [vmem:[%s0 + $0x20] sm:$0xf]
    %v31 = vld [vmem:[%s0 + $0x24] sm:$0xf]
    %v32 = vld [vmem:[%s0 + $0x28] sm:$0xf]
    %v33 = vld [vmem:[%s0 + $0x2c] sm:$0xf]
    %v34 = vld [vmem:[%s0 + $0x30] sm:$0xf]
    %v35 = vld [vmem:[%s0 + $0x34] sm:$0xf]
    %v36 = vld [vmem:[%s0 + $0x38] sm:$0xf]
    %v37 = vld [vmem:[%s0 + $0x3c] sm:$0xf]
    %v38 = vld [vmem:[%s1] sm:$0x7f]
    %v39 = vld [vmem:[%s2] sm:$0x1]
    %v41 = vlaneseq
    %v42 = vshrl.u32 %v41, 7
    %v43 = vsub.s32 0, %v42
    %v44 = vrot.slane %v39, %v43
    %v46 = vunpack.c.l.bf16 %v22
    %v47 = vunpack.c.l.bf16 %v23
    %v48 = vunpack.c.l.bf16 %v24
    %v49 = vunpack.c.l.bf16 %v25
    %v50 = vunpack.c.l.bf16 %v26
    %v51 = vunpack.c.l.bf16 %v27
    %v52 = vunpack.c.l.bf16 %v28
    %v53 = vunpack.c.l.bf16 %v29
    %v54 = vunpack.c.l.bf16 %v30
    %v55 = vunpack.c.l.bf16 %v31
    %v56 = vunpack.c.l.bf16 %v32
    %v57 = vunpack.c.l.bf16 %v33
    %v58 = vunpack.c.l.bf16 %v34
    %v59 = vunpack.c.l.bf16 %v35
    %v60 = vunpack.c.l.bf16 %v36
    %v61 = vunpack.c.l.bf16 %v37
    %63 = vset.pattern.permute.xlu0 0
    %64 = vperm.xlu0 %63, %v46
    %v65 = vpop.permute.xlu0 %64
    %68 = vset.pattern.permute.xlu0 0
    %69 = vperm.xlu0 %68, %v47
    %v70 = vpop.permute.xlu0 %69
    %73 = vset.pattern.permute.xlu0 0
    %74 = vperm.xlu0 %73, %v48
    %v75 = vpop.permute.xlu0 %74
    %78 = vset.pattern.permute.xlu0 0
    %79 = vperm.xlu0 %78, %v49
    %v80 = vpop.permute.xlu0 %79
    %83 = vset.pattern.permute.xlu0 0
    %84 = vperm.xlu0 %83, %v50
    %v85 = vpop.permute.xlu0 %84
    %88 = vset.pattern.permute.xlu0 0
    %89 = vperm.xlu0 %88, %v51
    %v90 = vpop.permute.xlu0 %89
    %93 = vset.pattern.permute.xlu0 0
    %94 = vperm.xlu0 %93, %v52
    %v95 = vpop.permute.xlu0 %94
    %98 = vset.pattern.permute.xlu0 0
    %99 = vperm.xlu0 %98, %v53
    %v100 = vpop.permute.xlu0 %99
    %103 = vset.pattern.permute.xlu0 0
    %104 = vperm.xlu0 %103, %v54
    %v105 = vpop.permute.xlu0 %104
    %108 = vset.pattern.permute.xlu0 0
    %109 = vperm.xlu0 %108, %v55
    %v110 = vpop.permute.xlu0 %109
    %113 = vset.pattern.permute.xlu0 0
    %114 = vperm.xlu0 %113, %v56
    %v115 = vpop.permute.xlu0 %114
    %118 = vset.pattern.permute.xlu0 0
    %119 = vperm.xlu0 %118, %v57
    %v120 = vpop.permute.xlu0 %119
    %123 = vset.pattern.permute.xlu0 0
    %124 = vperm.xlu0 %123, %v58
    %v125 = vpop.permute.xlu0 %124
    %128 = vset.pattern.permute.xlu0 0
    %129 = vperm.xlu0 %128, %v59
    %v130 = vpop.permute.xlu0 %129
    %133 = vset.pattern.permute.xlu0 0
    %134 = vperm.xlu0 %133, %v60
    %v135 = vpop.permute.xlu0 %134
    %138 = vset.pattern.permute.xlu0 0
    %139 = vperm.xlu0 %138, %v61
    %v140 = vpop.permute.xlu0 %139
    %v142 = vlaneseq
    %v143 = vshrl.u32 %v142, 7
    %v144 = vsub.s32 0, %v143
    %v145 = vrot.slane %v38, %v144
    %v146 = vmul.f32 %v65, %v145
    %v147 = vmul.f32 %v70, %v145
    %v148 = vmul.f32 %v75, %v145
    %v149 = vmul.f32 %v80, %v145
    %v150 = vmul.f32 %v85, %v145
    %v151 = vmul.f32 %v90, %v145
    %v152 = vmul.f32 %v95, %v145
    %v153 = vmul.f32 %v100, %v145
    %v154 = vmul.f32 %v105, %v145
    %v155 = vmul.f32 %v110, %v145
    %v156 = vmul.f32 %v115, %v145
    %v157 = vmul.f32 %v120, %v145
    %v158 = vmul.f32 %v125, %v145
    %v159 = vmul.f32 %v130, %v145
    %v160 = vmul.f32 %v135, %v145
    %v161 = vmul.f32 %v140, %v145
    %v162 = vadd.f32 %v44, %v146
    %v163 = vadd.f32 %v44, %v147
    %v164 = vadd.f32 %v44, %v148
    %v165 = vadd.f32 %v44, %v149
    %v166 = vadd.f32 %v44, %v150
    %v167 = vadd.f32 %v44, %v151
    %v168 = vadd.f32 %v44, %v152
    %v169 = vadd.f32 %v44, %v153
    %v170 = vadd.f32 %v44, %v154
    %v171 = vadd.f32 %v44, %v155
    %v172 = vadd.f32 %v44, %v156
    %v173 = vadd.f32 %v44, %v157
    %v174 = vadd.f32 %v44, %v158
    %v175 = vadd.f32 %v44, %v159
    %v176 = vadd.f32 %v44, %v160
    %v177 = vadd.f32 %v44, %v161
    %178 = vset.pattern.permute.xlu0 1
    %179 = vperm.xlu0 %178, %v46
    %v180 = vpop.permute.xlu0 %179
    %182 = vset.pattern.permute.xlu0 1
    %183 = vperm.xlu0 %182, %v47
    %v184 = vpop.permute.xlu0 %183
    %186 = vset.pattern.permute.xlu0 1
    %187 = vperm.xlu0 %186, %v48
    %v188 = vpop.permute.xlu0 %187
    %190 = vset.pattern.permute.xlu0 1
    %191 = vperm.xlu0 %190, %v49
    %v192 = vpop.permute.xlu0 %191
    %194 = vset.pattern.permute.xlu0 1
    %195 = vperm.xlu0 %194, %v50
    %v196 = vpop.permute.xlu0 %195
    %198 = vset.pattern.permute.xlu0 1
    %199 = vperm.xlu0 %198, %v51
    %v200 = vpop.permute.xlu0 %199
    %202 = vset.pattern.permute.xlu0 1
    %203 = vperm.xlu0 %202, %v52
    %v204 = vpop.permute.xlu0 %203
    %206 = vset.pattern.permute.xlu0 1
    %207 = vperm.xlu0 %206, %v53
    %v208 = vpop.permute.xlu0 %207
    %210 = vset.pattern.permute.xlu0 1
    %211 = vperm.xlu0 %210, %v54
    %v212 = vpop.permute.xlu0 %211
    %214 = vset.pattern.permute.xlu0 1
    %215 = vperm.xlu0 %214, %v55
    %v216 = vpop.permute.xlu0 %215
    %218 = vset.pattern.permute.xlu0 1
    %219 = vperm.xlu0 %218, %v56
    %v220 = vpop.permute.xlu0 %219
    %222 = vset.pattern.permute.xlu0 1
    %223 = vperm.xlu0 %222, %v57
    %v224 = vpop.permute.xlu0 %223
    %226 = vset.pattern.permute.xlu0 1
    %227 = vperm.xlu0 %226, %v58
    %v228 = vpop.permute.xlu0 %227
    %230 = vset.pattern.permute.xlu0 1
    %231 = vperm.xlu0 %230, %v59
    %v232 = vpop.permute.xlu0 %231
    %234 = vset.pattern.permute.xlu0 1
    %235 = vperm.xlu0 %234, %v60
    %v236 = vpop.permute.xlu0 %235
    %238 = vset.pattern.permute.xlu0 1
    %239 = vperm.xlu0 %238, %v61
    %v240 = vpop.permute.xlu0 %239
    %v242 = vlaneseq
    %v243 = vshrl.u32 %v242, 7
    %v244 = vsub.s32 1, %v243
    %v245 = vrot.slane %v38, %v244
    %v246 = vmul.f32 %v180, %v245
    %v247 = vmul.f32 %v184, %v245
    %v248 = vmul.f32 %v188, %v245
    %v249 = vmul.f32 %v192, %v245
    %v250 = vmul.f32 %v196, %v245
    %v251 = vmul.f32 %v200, %v245
    %v252 = vmul.f32 %v204, %v245
    %v253 = vmul.f32 %v208, %v245
    %v254 = vmul.f32 %v212, %v245
    %v255 = vmul.f32 %v216, %v245
    %v256 = vmul.f32 %v220, %v245
    %v257 = vmul.f32 %v224, %v245
    %v258 = vmul.f32 %v228, %v245
    %v259 = vmul.f32 %v232, %v245
    %v260 = vmul.f32 %v236, %v245
    %v261 = vmul.f32 %v240, %v245
    %v262 = vadd.f32 %v162, %v246
    %v263 = vadd.f32 %v163, %v247
    %v264 = vadd.f32 %v164, %v248
    %v265 = vadd.f32 %v165, %v249
    %v266 = vadd.f32 %v166, %v250
    %v267 = vadd.f32 %v167, %v251
    %v268 = vadd.f32 %v168, %v252
    %v269 = vadd.f32 %v169, %v253
    %v270 = vadd.f32 %v170, %v254
    %v271 = vadd.f32 %v171, %v255
    %v272 = vadd.f32 %v172, %v256
    %v273 = vadd.f32 %v173, %v257
    %v274 = vadd.f32 %v174, %v258
    %v275 = vadd.f32 %v175, %v259
    %v276 = vadd.f32 %v176, %v260
    %v277 = vadd.f32 %v177, %v261
    %278 = vset.pattern.permute.xlu0 2
    %279 = vperm.xlu0 %278, %v46
    %v280 = vpop.permute.xlu0 %279
    %282 = vset.pattern.permute.xlu0 2
    %283 = vperm.xlu0 %282, %v47
    %v284 = vpop.permute.xlu0 %283
    %286 = vset.pattern.permute.xlu0 2
    %287 = vperm.xlu0 %286, %v48
    %v288 = vpop.permute.xlu0 %287
    %290 = vset.pattern.permute.xlu0 2
    %291 = vperm.xlu0 %290, %v49
    %v292 = vpop.permute.xlu0 %291
    %294 = vset.pattern.permute.xlu0 2
    %295 = vperm.xlu0 %294, %v50
    %v296 = vpop.permute.xlu0 %295
    %298 = vset.pattern.permute.xlu0 2
    %299 = vperm.xlu0 %298, %v51
    %v300 = vpop.permute.xlu0 %299
    %302 = vset.pattern.permute.xlu0 2
    %303 = vperm.xlu0 %302, %v52
    %v304 = vpop.permute.xlu0 %303
    %306 = vset.pattern.permute.xlu0 2
    %307 = vperm.xlu0 %306, %v53
    %v308 = vpop.permute.xlu0 %307
    %310 = vset.pattern.permute.xlu0 2
    %311 = vperm.xlu0 %310, %v54
    %v312 = vpop.permute.xlu0 %311
    %314 = vset.pattern.permute.xlu0 2
    %315 = vperm.xlu0 %314, %v55
    %v316 = vpop.permute.xlu0 %315
    %318 = vset.pattern.permute.xlu0 2
    %319 = vperm.xlu0 %318, %v56
    %v320 = vpop.permute.xlu0 %319
    %322 = vset.pattern.permute.xlu0 2
    %323 = vperm.xlu0 %322, %v57
    %v324 = vpop.permute.xlu0 %323
    %326 = vset.pattern.permute.xlu0 2
    %327 = vperm.xlu0 %326, %v58
    %v328 = vpop.permute.xlu0 %327
    %330 = vset.pattern.permute.xlu0 2
    %331 = vperm.xlu0 %330, %v59
    %v332 = vpop.permute.xlu0 %331
    %334 = vset.pattern.permute.xlu0 2
    %335 = vperm.xlu0 %334, %v60
    %v336 = vpop.permute.xlu0 %335
    %338 = vset.pattern.permute.xlu0 2
    %339 = vperm.xlu0 %338, %v61
    %v340 = vpop.permute.xlu0 %339
    %v342 = vlaneseq
    %v343 = vshrl.u32 %v342, 7
    %v344 = vsub.s32 2, %v343
    %v345 = vrot.slane %v38, %v344
    %v346 = vmul.f32 %v280, %v345
    %v347 = vmul.f32 %v284, %v345
    %v348 = vmul.f32 %v288, %v345
    %v349 = vmul.f32 %v292, %v345
    %v350 = vmul.f32 %v296, %v345
    %v351 = vmul.f32 %v300, %v345
    %v352 = vmul.f32 %v304, %v345
    %v353 = vmul.f32 %v308, %v345
    %v354 = vmul.f32 %v312, %v345
    %v355 = vmul.f32 %v316, %v345
    %v356 = vmul.f32 %v320, %v345
    %v357 = vmul.f32 %v324, %v345
    %v358 = vmul.f32 %v328, %v345
    %v359 = vmul.f32 %v332, %v345
    %v360 = vmul.f32 %v336, %v345
    %v361 = vmul.f32 %v340, %v345
    %v362 = vadd.f32 %v262, %v346
    %v363 = vadd.f32 %v263, %v347
    %v364 = vadd.f32 %v264, %v348
    %v365 = vadd.f32 %v265, %v349
    %v366 = vadd.f32 %v266, %v350
    %v367 = vadd.f32 %v267, %v351
    %v368 = vadd.f32 %v268, %v352
    %v369 = vadd.f32 %v269, %v353
    %v370 = vadd.f32 %v270, %v354
    %v371 = vadd.f32 %v271, %v355
    %v372 = vadd.f32 %v272, %v356
    %v373 = vadd.f32 %v273, %v357
    %v374 = vadd.f32 %v274, %v358
    %v375 = vadd.f32 %v275, %v359
    %v376 = vadd.f32 %v276, %v360
    %v377 = vadd.f32 %v277, %v361
    %378 = vset.pattern.permute.xlu0 3
    %379 = vperm.xlu0 %378, %v46
    %v380 = vpop.permute.xlu0 %379
    %382 = vset.pattern.permute.xlu0 3
    %383 = vperm.xlu0 %382, %v47
    %v384 = vpop.permute.xlu0 %383
    %386 = vset.pattern.permute.xlu0 3
    %387 = vperm.xlu0 %386, %v48
    %v388 = vpop.permute.xlu0 %387
    %390 = vset.pattern.permute.xlu0 3
    %391 = vperm.xlu0 %390, %v49
    %v392 = vpop.permute.xlu0 %391
    %394 = vset.pattern.permute.xlu0 3
    %395 = vperm.xlu0 %394, %v50
    %v396 = vpop.permute.xlu0 %395
    %398 = vset.pattern.permute.xlu0 3
    %399 = vperm.xlu0 %398, %v51
    %v400 = vpop.permute.xlu0 %399
    %402 = vset.pattern.permute.xlu0 3
    %403 = vperm.xlu0 %402, %v52
    %v404 = vpop.permute.xlu0 %403
    %406 = vset.pattern.permute.xlu0 3
    %407 = vperm.xlu0 %406, %v53
    %v408 = vpop.permute.xlu0 %407
    %410 = vset.pattern.permute.xlu0 3
    %411 = vperm.xlu0 %410, %v54
    %v412 = vpop.permute.xlu0 %411
    %414 = vset.pattern.permute.xlu0 3
    %415 = vperm.xlu0 %414, %v55
    %v416 = vpop.permute.xlu0 %415
    %418 = vset.pattern.permute.xlu0 3
    %419 = vperm.xlu0 %418, %v56
    %v420 = vpop.permute.xlu0 %419
    %422 = vset.pattern.permute.xlu0 3
    %423 = vperm.xlu0 %422, %v57
    %v424 = vpop.permute.xlu0 %423
    %426 = vset.pattern.permute.xlu0 3
    %427 = vperm.xlu0 %426, %v58
    %v428 = vpop.permute.xlu0 %427
    %430 = vset.pattern.permute.xlu0 3
    %431 = vperm.xlu0 %430, %v59
    %v432 = vpop.permute.xlu0 %431
    %434 = vset.pattern.permute.xlu0 3
    %435 = vperm.xlu0 %434, %v60
    %v436 = vpop.permute.xlu0 %435
    %438 = vset.pattern.permute.xlu0 3
    %439 = vperm.xlu0 %438, %v61
    %v440 = vpop.permute.xlu0 %439
    %v442 = vlaneseq
    %v443 = vshrl.u32 %v442, 7
    %v444 = vsub.s32 3, %v443
    %v445 = vrot.slane %v38, %v444
    %v446 = vmul.f32 %v380, %v445
    %v447 = vmul.f32 %v384, %v445
    %v448 = vmul.f32 %v388, %v445
    %v449 = vmul.f32 %v392, %v445
    %v450 = vmul.f32 %v396, %v445
    %v451 = vmul.f32 %v400, %v445
    %v452 = vmul.f32 %v404, %v445
    %v453 = vmul.f32 %v408, %v445
    %v454 = vmul.f32 %v412, %v445
    %v455 = vmul.f32 %v416, %v445
    %v456 = vmul.f32 %v420, %v445
    %v457 = vmul.f32 %v424, %v445
    %v458 = vmul.f32 %v428, %v445
    %v459 = vmul.f32 %v432, %v445
    %v460 = vmul.f32 %v436, %v445
    %v461 = vmul.f32 %v440, %v445
    %v462 = vadd.f32 %v362, %v446
    %v463 = vadd.f32 %v363, %v447
    %v464 = vadd.f32 %v364, %v448
    %v465 = vadd.f32 %v365, %v449
    %v466 = vadd.f32 %v366, %v450
    %v467 = vadd.f32 %v367, %v451
    %v468 = vadd.f32 %v368, %v452
    %v469 = vadd.f32 %v369, %v453
    %v470 = vadd.f32 %v370, %v454
    %v471 = vadd.f32 %v371, %v455
    %v472 = vadd.f32 %v372, %v456
    %v473 = vadd.f32 %v373, %v457
    %v474 = vadd.f32 %v374, %v458
    %v475 = vadd.f32 %v375, %v459
    %v476 = vadd.f32 %v376, %v460
    %v477 = vadd.f32 %v377, %v461
    %478 = vset.pattern.permute.xlu0 4
    %479 = vperm.xlu0 %478, %v46
    %v480 = vpop.permute.xlu0 %479
    %482 = vset.pattern.permute.xlu0 4
    %483 = vperm.xlu0 %482, %v47
    %v484 = vpop.permute.xlu0 %483
    %486 = vset.pattern.permute.xlu0 4
    %487 = vperm.xlu0 %486, %v48
    %v488 = vpop.permute.xlu0 %487
    %490 = vset.pattern.permute.xlu0 4
    %491 = vperm.xlu0 %490, %v49
    %v492 = vpop.permute.xlu0 %491
    %494 = vset.pattern.permute.xlu0 4
    %495 = vperm.xlu0 %494, %v50
    %v496 = vpop.permute.xlu0 %495
    %498 = vset.pattern.permute.xlu0 4
    %499 = vperm.xlu0 %498, %v51
    %v500 = vpop.permute.xlu0 %499
    %502 = vset.pattern.permute.xlu0 4
    %503 = vperm.xlu0 %502, %v52
    %v504 = vpop.permute.xlu0 %503
    %506 = vset.pattern.permute.xlu0 4
    %507 = vperm.xlu0 %506, %v53
    %v508 = vpop.permute.xlu0 %507
    %510 = vset.pattern.permute.xlu0 4
    %511 = vperm.xlu0 %510, %v54
    %v512 = vpop.permute.xlu0 %511
    %514 = vset.pattern.permute.xlu0 4
    %515 = vperm.xlu0 %514, %v55
    %v516 = vpop.permute.xlu0 %515
    %518 = vset.pattern.permute.xlu0 4
    %519 = vperm.xlu0 %518, %v56
    %v520 = vpop.permute.xlu0 %519
    %522 = vset.pattern.permute.xlu0 4
    %523 = vperm.xlu0 %522, %v57
    %v524 = vpop.permute.xlu0 %523
    %526 = vset.pattern.permute.xlu0 4
    %527 = vperm.xlu0 %526, %v58
    %v528 = vpop.permute.xlu0 %527
    %530 = vset.pattern.permute.xlu0 4
    %531 = vperm.xlu0 %530, %v59
    %v532 = vpop.permute.xlu0 %531
    %534 = vset.pattern.permute.xlu0 4
    %535 = vperm.xlu0 %534, %v60
    %v536 = vpop.permute.xlu0 %535
    %538 = vset.pattern.permute.xlu0 4
    %539 = vperm.xlu0 %538, %v61
    %v540 = vpop.permute.xlu0 %539
    %v542 = vlaneseq
    %v543 = vshrl.u32 %v542, 7
    %v544 = vsub.s32 4, %v543
    %v545 = vrot.slane %v38, %v544
    %v546 = vmul.f32 %v480, %v545
    %v547 = vmul.f32 %v484, %v545
    %v548 = vmul.f32 %v488, %v545
    %v549 = vmul.f32 %v492, %v545
    %v550 = vmul.f32 %v496, %v545
    %v551 = vmul.f32 %v500, %v545
    %v552 = vmul.f32 %v504, %v545
    %v553 = vmul.f32 %v508, %v545
    %v554 = vmul.f32 %v512, %v545
    %v555 = vmul.f32 %v516, %v545
    %v556 = vmul.f32 %v520, %v545
    %v557 = vmul.f32 %v524, %v545
    %v558 = vmul.f32 %v528, %v545
    %v559 = vmul.f32 %v532, %v545
    %v560 = vmul.f32 %v536, %v545
    %v561 = vmul.f32 %v540, %v545
    %v562 = vadd.f32 %v462, %v546
    %v563 = vadd.f32 %v463, %v547
    %v564 = vadd.f32 %v464, %v548
    %v565 = vadd.f32 %v465, %v549
    %v566 = vadd.f32 %v466, %v550
    %v567 = vadd.f32 %v467, %v551
    %v568 = vadd.f32 %v468, %v552
    %v569 = vadd.f32 %v469, %v553
    %v570 = vadd.f32 %v470, %v554
    %v571 = vadd.f32 %v471, %v555
    %v572 = vadd.f32 %v472, %v556
    %v573 = vadd.f32 %v473, %v557
    %v574 = vadd.f32 %v474, %v558
    %v575 = vadd.f32 %v475, %v559
    %v576 = vadd.f32 %v476, %v560
    %v577 = vadd.f32 %v477, %v561
    %578 = vset.pattern.permute.xlu0 5
    %579 = vperm.xlu0 %578, %v46
    %v580 = vpop.permute.xlu0 %579
    %582 = vset.pattern.permute.xlu0 5
    %583 = vperm.xlu0 %582, %v47
    %v584 = vpop.permute.xlu0 %583
    %586 = vset.pattern.permute.xlu0 5
    %587 = vperm.xlu0 %586, %v48
    %v588 = vpop.permute.xlu0 %587
    %590 = vset.pattern.permute.xlu0 5
    %591 = vperm.xlu0 %590, %v49
    %v592 = vpop.permute.xlu0 %591
    %594 = vset.pattern.permute.xlu0 5
    %595 = vperm.xlu0 %594, %v50
    %v596 = vpop.permute.xlu0 %595
    %598 = vset.pattern.permute.xlu0 5
    %599 = vperm.xlu0 %598, %v51
    %v600 = vpop.permute.xlu0 %599
    %602 = vset.pattern.permute.xlu0 5
    %603 = vperm.xlu0 %602, %v52
    %v604 = vpop.permute.xlu0 %603
    %606 = vset.pattern.permute.xlu0 5
    %607 = vperm.xlu0 %606, %v53
    %v608 = vpop.permute.xlu0 %607
    %610 = vset.pattern.permute.xlu0 5
    %611 = vperm.xlu0 %610, %v54
    %v612 = vpop.permute.xlu0 %611
    %614 = vset.pattern.permute.xlu0 5
    %615 = vperm.xlu0 %614, %v55
    %v616 = vpop.permute.xlu0 %615
    %618 = vset.pattern.permute.xlu0 5
    %619 = vperm.xlu0 %618, %v56
    %v620 = vpop.permute.xlu0 %619
    %622 = vset.pattern.permute.xlu0 5
    %623 = vperm.xlu0 %622, %v57
    %v624 = vpop.permute.xlu0 %623
    %626 = vset.pattern.permute.xlu0 5
    %627 = vperm.xlu0 %626, %v58
    %v628 = vpop.permute.xlu0 %627
    %630 = vset.pattern.permute.xlu0 5
    %631 = vperm.xlu0 %630, %v59
    %v632 = vpop.permute.xlu0 %631
    %634 = vset.pattern.permute.xlu0 5
    %635 = vperm.xlu0 %634, %v60
    %v636 = vpop.permute.xlu0 %635
    %638 = vset.pattern.permute.xlu0 5
    %639 = vperm.xlu0 %638, %v61
    %v640 = vpop.permute.xlu0 %639
    %v642 = vlaneseq
    %v643 = vshrl.u32 %v642, 7
    %v644 = vsub.s32 5, %v643
    %v645 = vrot.slane %v38, %v644
    %v646 = vmul.f32 %v580, %v645
    %v647 = vmul.f32 %v584, %v645
    %v648 = vmul.f32 %v588, %v645
    %v649 = vmul.f32 %v592, %v645
    %v650 = vmul.f32 %v596, %v645
    %v651 = vmul.f32 %v600, %v645
    %v652 = vmul.f32 %v604, %v645
    %v653 = vmul.f32 %v608, %v645
    %v654 = vmul.f32 %v612, %v645
    %v655 = vmul.f32 %v616, %v645
    %v656 = vmul.f32 %v620, %v645
    %v657 = vmul.f32 %v624, %v645
    %v658 = vmul.f32 %v628, %v645
    %v659 = vmul.f32 %v632, %v645
    %v660 = vmul.f32 %v636, %v645
    %v661 = vmul.f32 %v640, %v645
    %v662 = vadd.f32 %v562, %v646
    %v663 = vadd.f32 %v563, %v647
    %v664 = vadd.f32 %v564, %v648
    %v665 = vadd.f32 %v565, %v649
    %v666 = vadd.f32 %v566, %v650
    %v667 = vadd.f32 %v567, %v651
    %v668 = vadd.f32 %v568, %v652
    %v669 = vadd.f32 %v569, %v653
    %v670 = vadd.f32 %v570, %v654
    %v671 = vadd.f32 %v571, %v655
    %v672 = vadd.f32 %v572, %v656
    %v673 = vadd.f32 %v573, %v657
    %v674 = vadd.f32 %v574, %v658
    %v675 = vadd.f32 %v575, %v659
    %v676 = vadd.f32 %v576, %v660
    %v677 = vadd.f32 %v577, %v661
    %678 = vset.pattern.permute.xlu0 6
    %679 = vperm.xlu0 %678, %v46
    %v680 = vpop.permute.xlu0 %679
    %682 = vset.pattern.permute.xlu0 6
    %683 = vperm.xlu0 %682, %v47
    %v684 = vpop.permute.xlu0 %683
    %686 = vset.pattern.permute.xlu0 6
    %687 = vperm.xlu0 %686, %v48
    %v688 = vpop.permute.xlu0 %687
    %690 = vset.pattern.permute.xlu0 6
    %691 = vperm.xlu0 %690, %v49
    %v692 = vpop.permute.xlu0 %691
    %694 = vset.pattern.permute.xlu0 6
    %695 = vperm.xlu0 %694, %v50
    %v696 = vpop.permute.xlu0 %695
    %698 = vset.pattern.permute.xlu0 6
    %699 = vperm.xlu0 %698, %v51
    %v700 = vpop.permute.xlu0 %699
    %702 = vset.pattern.permute.xlu0 6
    %703 = vperm.xlu0 %702, %v52
    %v704 = vpop.permute.xlu0 %703
    %706 = vset.pattern.permute.xlu0 6
    %707 = vperm.xlu0 %706, %v53
    %v708 = vpop.permute.xlu0 %707
    %710 = vset.pattern.permute.xlu0 6
    %711 = vperm.xlu0 %710, %v54
    %v712 = vpop.permute.xlu0 %711
    %714 = vset.pattern.permute.xlu0 6
    %715 = vperm.xlu0 %714, %v55
    %v716 = vpop.permute.xlu0 %715
    %718 = vset.pattern.permute.xlu0 6
    %719 = vperm.xlu0 %718, %v56
    %v720 = vpop.permute.xlu0 %719
    %722 = vset.pattern.permute.xlu0 6
    %723 = vperm.xlu0 %722, %v57
    %v724 = vpop.permute.xlu0 %723
    %726 = vset.pattern.permute.xlu0 6
    %727 = vperm.xlu0 %726, %v58
    %v728 = vpop.permute.xlu0 %727
    %730 = vset.pattern.permute.xlu0 6
    %731 = vperm.xlu0 %730, %v59
    %v732 = vpop.permute.xlu0 %731
    %734 = vset.pattern.permute.xlu0 6
    %735 = vperm.xlu0 %734, %v60
    %v736 = vpop.permute.xlu0 %735
    %738 = vset.pattern.permute.xlu0 6
    %739 = vperm.xlu0 %738, %v61
    %v740 = vpop.permute.xlu0 %739
    %v742 = vlaneseq
    %v743 = vshrl.u32 %v742, 7
    %v744 = vsub.s32 6, %v743
    %v745 = vrot.slane %v38, %v744
    %v746 = vmul.f32 %v680, %v745
    %v747 = vmul.f32 %v684, %v745
    %v748 = vmul.f32 %v688, %v745
    %v749 = vmul.f32 %v692, %v745
    %v750 = vmul.f32 %v696, %v745
    %v751 = vmul.f32 %v700, %v745
    %v752 = vmul.f32 %v704, %v745
    %v753 = vmul.f32 %v708, %v745
    %v754 = vmul.f32 %v712, %v745
    %v755 = vmul.f32 %v716, %v745
    %v756 = vmul.f32 %v720, %v745
    %v757 = vmul.f32 %v724, %v745
    %v758 = vmul.f32 %v728, %v745
    %v759 = vmul.f32 %v732, %v745
    %v760 = vmul.f32 %v736, %v745
    %v761 = vmul.f32 %v740, %v745
    %v762 = vadd.f32 %v662, %v746
    %v763 = vadd.f32 %v663, %v747
    %v764 = vadd.f32 %v664, %v748
    %v765 = vadd.f32 %v665, %v749
    %v766 = vadd.f32 %v666, %v750
    %v767 = vadd.f32 %v667, %v751
    %v768 = vadd.f32 %v668, %v752
    %v769 = vadd.f32 %v669, %v753
    %v770 = vadd.f32 %v670, %v754
    %v771 = vadd.f32 %v671, %v755
    %v772 = vadd.f32 %v672, %v756
    %v773 = vadd.f32 %v673, %v757
    %v774 = vadd.f32 %v674, %v758
    %v775 = vadd.f32 %v675, %v759
    %v776 = vadd.f32 %v676, %v760
    %v777 = vadd.f32 %v677, %v761
    %v778 = vmax.f32 %v762, 0.0
    %v779 = vmax.f32 %v763, 0.0
    %v780 = vmax.f32 %v764, 0.0
    %v781 = vmax.f32 %v765, 0.0
    %v782 = vmax.f32 %v766, 0.0
    %v783 = vmax.f32 %v767, 0.0
    %v784 = vmax.f32 %v768, 0.0
    %v785 = vmax.f32 %v769, 0.0
    %v786 = vmax.f32 %v770, 0.0
    %v787 = vmax.f32 %v771, 0.0
    %v788 = vmax.f32 %v772, 0.0
    %v789 = vmax.f32 %v773, 0.0
    %v790 = vmax.f32 %v774, 0.0
    %v791 = vmax.f32 %v775, 0.0
    %v792 = vmax.f32 %v776, 0.0
    %v793 = vmax.f32 %v777, 0.0
    %v794 = vpack.c.bf16 %v779, %v778
    %v795 = vpack.c.bf16 %v781, %v780
    %v796 = vpack.c.bf16 %v783, %v782
    %v797 = vpack.c.bf16 %v785, %v784
    %v798 = vpack.c.bf16 %v787, %v786
    %v799 = vpack.c.bf16 %v789, %v788
    %v800 = vpack.c.bf16 %v791, %v790
    %v801 = vpack.c.bf16 %v793, %v792
    %v802 = vld [vmem:[%s3] sm:$0xf]
    %v803 = vld [vmem:[%s3 + $0x4] sm:$0xf]
    %v804 = vld [vmem:[%s4] sm:$0x1]
    %v806 = vlaneseq
    %v807 = vshrl.u32 %v806, 7
    %v808 = vsub.s32 0, %v807
    %v809 = vrot.slane %v804, %v808
    %v813 = vunpack.c.l.b16 %v802
    %v814 = vunpack.c.l.b16 %v803
    %v815 = vpack.c.b16 %v814, %v813
    %vm817 = vcmask 130048
    %v819 = vsel %vm817, %v794, 0
    %v822 = vsel %vm817, %v795, 0
    %v825 = vsel %vm817, %v796, 0
    %v828 = vsel %vm817, %v797, 0
    %v831 = vsel %vm817, %v798, 0
    %v834 = vsel %vm817, %v799, 0
    %v837 = vsel %vm817, %v800, 0
    %v840 = vsel %vm817, %v801, 0
    %842 = vmatprep.subr.bf16.mxu0 0
    %843 = vmatpush1.bf16.msra.mxu0 %v815
    %844 = vmatprep.subr.bf16.mxu0 0
    %845 = vmatpush1.bf16.msra.mxu0 0
    %846 = vmatprep.subr.bf16.mxu0 0
    %847 = vmatpush1.bf16.msra.mxu0 0
    %848 = vmatprep.subr.bf16.mxu0 0
    %849 = vmatpush1.bf16.msra.mxu0 0
    %850 = vmatprep.subr.bf16.mxu0 0
    %851 = vmatpush1.bf16.msra.mxu0 0
    %852 = vmatprep.subr.bf16.mxu0 0
    %853 = vmatpush1.bf16.msra.mxu0 0
    %854 = vmatprep.subr.bf16.mxu0 0
    %855 = vmatpush1.bf16.msra.mxu0 0
    %856 = vmatprep.subr.bf16.mxu0 0
    %857 = vmatpush1.bf16.msra.mxu0 0
    %858 = vmatprep.subr.bf16.mxu0 0
    %859 = vmatpush1.bf16.msra.mxu0 0
    %860 = vmatprep.subr.bf16.mxu0 0
    %861 = vmatpush1.bf16.msra.mxu0 0
    %862 = vmatprep.subr.bf16.mxu0 0
    %863 = vmatpush1.bf16.msra.mxu0 0
    %864 = vmatprep.subr.bf16.mxu0 0
    %865 = vmatpush1.bf16.msra.mxu0 0
    %866 = vmatprep.subr.bf16.mxu0 0
    %867 = vmatpush1.bf16.msra.mxu0 0
    %868 = vmatprep.subr.bf16.mxu0 0
    %869 = vmatpush1.bf16.msra.mxu0 0
    %870 = vmatprep.subr.bf16.mxu0 0
    %871 = vmatpush1.bf16.msra.mxu0 0
    %872 = vmatprep.subr.bf16.mxu0 0
    %873 = vmatpush1.bf16.msra.mxu0 0
    %874 = vmatprep.mubr.bf16.mxu0 0
    %875 = vmatmul.mubr.bf16.gmra.mrb[0].mxu0 %v819
    %v876 = vpop.f32.mrb[0].mxu0
    %v877 = vadd.f32 %v809, %v876
    %v878 = vpop.f32.mrb[0].mxu0
    %v879 = vpop.f32.mrb[0].mxu0
    %v880 = vadd.f32 %v809, %v879
    %v881 = vpop.f32.mrb[0].mxu0
    %882 = vmatprep.mubr.bf16.mxu0 0
    %883 = vmatmul.mubr.bf16.gmra.mrb[0].mxu0 %v822
    %v884 = vpop.f32.mrb[0].mxu0
    %v885 = vadd.f32 %v809, %v884
    %v886 = vpop.f32.mrb[0].mxu0
    %v887 = vpop.f32.mrb[0].mxu0
    %v888 = vadd.f32 %v809, %v887
    %v889 = vpop.f32.mrb[0].mxu0
    %890 = vmatprep.mubr.bf16.mxu0 0
    %891 = vmatmul.mubr.bf16.gmra.mrb[0].mxu0 %v825
    %v892 = vpop.f32.mrb[0].mxu0
    %v893 = vadd.f32 %v809, %v892
    %v894 = vpop.f32.mrb[0].mxu0
    %v895 = vpop.f32.mrb[0].mxu0
    %v896 = vadd.f32 %v809, %v895
    %v897 = vpop.f32.mrb[0].mxu0
    %898 = vmatprep.mubr.bf16.mxu0 0
    %899 = vmatmul.mubr.bf16.gmra.mrb[0].mxu0 %v828
    %v900 = vpop.f32.mrb[0].mxu0
    %v901 = vadd.f32 %v809, %v900
    %v902 = vpop.f32.mrb[0].mxu0
    %v903 = vpop.f32.mrb[0].mxu0
    %v904 = vadd.f32 %v809, %v903
    %v905 = vpop.f32.mrb[0].mxu0
    %906 = vmatprep.mubr.bf16.mxu0 0
    %907 = vmatmul.mubr.bf16.gmra.mrb[0].mxu0 %v831
    %v908 = vpop.f32.mrb[0].mxu0
    %v909 = vadd.f32 %v809, %v908
    %v910 = vpop.f32.mrb[0].mxu0
    %v911 = vpop.f32.mrb[0].mxu0
    %v912 = vadd.f32 %v809, %v911
    %v913 = vpop.f32.mrb[0].mxu0
    %914 = vmatprep.mubr.bf16.mxu0 0
    %915 = vmatmul.mubr.bf16.gmra.mrb[0].mxu0 %v834
    %v916 = vpop.f32.mrb[0].mxu0
    %v917 = vadd.f32 %v809, %v916
    %v918 = vpop.f32.mrb[0].mxu0
    %v919 = vpop.f32.mrb[0].mxu0
    %v920 = vadd.f32 %v809, %v919
    %v921 = vpop.f32.mrb[0].mxu0
    %922 = vmatprep.mubr.bf16.mxu0 0
    %923 = vmatmul.mubr.bf16.gmra.mrb[0].mxu0 %v837
    %v924 = vpop.f32.mrb[0].mxu0
    %v925 = vadd.f32 %v809, %v924
    %v926 = vpop.f32.mrb[0].mxu0
    %v927 = vpop.f32.mrb[0].mxu0
    %v928 = vadd.f32 %v809, %v927
    %v929 = vpop.f32.mrb[0].mxu0
    %930 = vmatprep.mubr.bf16.mxu0 0
    %931 = vmatmul.mubr.bf16.gmra.mrb[0].mxu0 %v840
    %v932 = vpop.f32.mrb[0].mxu0
    %v933 = vadd.f32 %v809, %v932
    %v934 = vpop.f32.mrb[0].mxu0
    %v935 = vpop.f32.mrb[0].mxu0
    %v936 = vadd.f32 %v809, %v935
    %v937 = vpop.f32.mrb[0].mxu0
    %938 = vdwg.mxu0
    %v939 = vmax.f32 %v877, 0.0
    %v940 = vmax.f32 %v880, 0.0
    %v941 = vmax.f32 %v885, 0.0
    %v942 = vmax.f32 %v888, 0.0
    %v943 = vmax.f32 %v893, 0.0
    %v944 = vmax.f32 %v896, 0.0
    %v945 = vmax.f32 %v901, 0.0
    %v946 = vmax.f32 %v904, 0.0
    %v947 = vmax.f32 %v909, 0.0
    %v948 = vmax.f32 %v912, 0.0
    %v949 = vmax.f32 %v917, 0.0
    %v950 = vmax.f32 %v920, 0.0
    %v951 = vmax.f32 %v925, 0.0
    %v952 = vmax.f32 %v928, 0.0
    %v953 = vmax.f32 %v933, 0.0
    %v954 = vmax.f32 %v936, 0.0
    %v955 = vrot.slane %v939, 4
    %v956 = vmax.f32 %v939, %v955
    %v957 = vrot.slane %v956, 2
    %v958 = vmax.f32 %v956, %v957
    %v959 = vrot.slane %v958, 1
    %v960 = vmax.f32 %v958, %v959
    %v961 = vrot.slane %v940, 4
    %v962 = vmax.f32 %v940, %v961
    %v963 = vrot.slane %v962, 2
    %v964 = vmax.f32 %v962, %v963
    %v965 = vrot.slane %v964, 1
    %v966 = vmax.f32 %v964, %v965
    %v967 = vrot.slane %v941, 4
    %v968 = vmax.f32 %v941, %v967
    %v969 = vrot.slane %v968, 2
    %v970 = vmax.f32 %v968, %v969
    %v971 = vrot.slane %v970, 1
    %v972 = vmax.f32 %v970, %v971
    %v973 = vrot.slane %v942, 4
    %v974 = vmax.f32 %v942, %v973
    %v975 = vrot.slane %v974, 2
    %v976 = vmax.f32 %v974, %v975
    %v977 = vrot.slane %v976, 1
    %v978 = vmax.f32 %v976, %v977
    %v979 = vrot.slane %v943, 4
    %v980 = vmax.f32 %v943, %v979
    %v981 = vrot.slane %v980, 2
    %v982 = vmax.f32 %v980, %v981
    %v983 = vrot.slane %v982, 1
    %v984 = vmax.f32 %v982, %v983
    %v985 = vrot.slane %v944, 4
    %v986 = vmax.f32 %v944, %v985
    %v987 = vrot.slane %v986, 2
    %v988 = vmax.f32 %v986, %v987
    %v989 = vrot.slane %v988, 1
    %v990 = vmax.f32 %v988, %v989
    %v991 = vrot.slane %v945, 4
    %v992 = vmax.f32 %v945, %v991
    %v993 = vrot.slane %v992, 2
    %v994 = vmax.f32 %v992, %v993
    %v995 = vrot.slane %v994, 1
    %v996 = vmax.f32 %v994, %v995
    %v997 = vrot.slane %v946, 4
    %v998 = vmax.f32 %v946, %v997
    %v999 = vrot.slane %v998, 2
    %v1000 = vmax.f32 %v998, %v999
    %v1001 = vrot.slane %v1000, 1
    %v1002 = vmax.f32 %v1000, %v1001
    %v1003 = vrot.slane %v947, 4
    %v1004 = vmax.f32 %v947, %v1003
    %v1005 = vrot.slane %v1004, 2
    %v1006 = vmax.f32 %v1004, %v1005
    %v1007 = vrot.slane %v1006, 1
    %v1008 = vmax.f32 %v1006, %v1007
    %v1009 = vrot.slane %v948, 4
    %v1010 = vmax.f32 %v948, %v1009
    %v1011 = vrot.slane %v1010, 2
    %v1012 = vmax.f32 %v1010, %v1011
    %v1013 = vrot.slane %v1012, 1
    %v1014 = vmax.f32 %v1012, %v1013
    %v1015 = vrot.slane %v949, 4
    %v1016 = vmax.f32 %v949, %v1015
    %v1017 = vrot.slane %v1016, 2
    %v1018 = vmax.f32 %v1016, %v1017
    %v1019 = vrot.slane %v1018, 1
    %v1020 = vmax.f32 %v1018, %v1019
    %v1021 = vrot.slane %v950, 4
    %v1022 = vmax.f32 %v950, %v1021
    %v1023 = vrot.slane %v1022, 2
    %v1024 = vmax.f32 %v1022, %v1023
    %v1025 = vrot.slane %v1024, 1
    %v1026 = vmax.f32 %v1024, %v1025
    %v1027 = vrot.slane %v951, 4
    %v1028 = vmax.f32 %v951, %v1027
    %v1029 = vrot.slane %v1028, 2
    %v1030 = vmax.f32 %v1028, %v1029
    %v1031 = vrot.slane %v1030, 1
    %v1032 = vmax.f32 %v1030, %v1031
    %v1033 = vrot.slane %v952, 4
    %v1034 = vmax.f32 %v952, %v1033
    %v1035 = vrot.slane %v1034, 2
    %v1036 = vmax.f32 %v1034, %v1035
    %v1037 = vrot.slane %v1036, 1
    %v1038 = vmax.f32 %v1036, %v1037
    %v1039 = vrot.slane %v953, 4
    %v1040 = vmax.f32 %v953, %v1039
    %v1041 = vrot.slane %v1040, 2
    %v1042 = vmax.f32 %v1040, %v1041
    %v1043 = vrot.slane %v1042, 1
    %v1044 = vmax.f32 %v1042, %v1043
    %v1045 = vrot.slane %v954, 4
    %v1046 = vmax.f32 %v954, %v1045
    %v1047 = vrot.slane %v1046, 2
    %v1048 = vmax.f32 %v1046, %v1047
    %v1049 = vrot.slane %v1048, 1
    %v1050 = vmax.f32 %v1048, %v1049
    %vm1067 = vcmask 1041409
    %v1068 = vsel %vm1067, %v966, %v960
    %vm1069 = vcmask 1042434
    %v1070 = vsel %vm1069, %v972, %v1068
    %vm1071 = vcmask 1043459
    %v1072 = vsel %vm1071, %v978, %v1070
    %vm1073 = vcmask 1044484
    %v1074 = vsel %vm1073, %v984, %v1072
    %vm1075 = vcmask 1045509
    %v1076 = vsel %vm1075, %v990, %v1074
    %vm1077 = vcmask 1046534
    %v1078 = vsel %vm1077, %v996, %v1076
    %vm1079 = vcmask 1047559
    %v1080 = vsel %vm1079, %v1002, %v1078
    %v1081 = vsel %vm1067, %v1014, %v1008
    %v1082 = vsel %vm1069, %v1020, %v1081
    %v1083 = vsel %vm1071, %v1026, %v1082
    %v1084 = vsel %vm1073, %v1032, %v1083
    %v1085 = vsel %vm1075, %v1038, %v1084
    %v1086 = vsel %vm1077, %v1044, %v1085
    %v1087 = vsel %vm1079, %v1050, %v1086
    %1090 = vst [vmem:[#allocation2] sm:$0xff] %v1080
    %1091 = vst [vmem:[#allocation2 + $0x8] sm:$0xff] %v1087
    // Predicated region
    $region22: #{tpu_custom_call.1} parent=1 // pred_check
      _
    $region23: #{tpu_custom_call.1} parent=1 // pred_check_branch
      %1093 = sbr.rel (0) target = $region25
    $region24: #{tpu_custom_call.1} parent=1 // pred_region
      %s1095 = ssub.s32 256, 256
      %1096 = vsyncadd [#allocation3], %s1095
      %s1097 = sshll.u32 [#allocation2], 4
      %s1098 = int_to_ptr.vmem [resolvable:$true] %s1097
      %1103 = dma.vmem_to_hbm [thread:$0]  %s1098, 256, %s5, [#allocation3], 128, 128, 8
    $region25: #{tpu_custom_call.1} parent=1 // pred_fallthru
      _
    // Predicated region
    $region26: #{tpu_custom_call.1} parent=1 // pred_check
      _
    $region27: #{tpu_custom_call.1} parent=1 // pred_check_branch
      %1105 = sbr.rel (0) target = $region29
    $region28: #{tpu_custom_call.1} parent=1 // pred_region
      %1106 = dma.done [#allocation3], 256
    $region29: #{tpu_custom_call.1} parent=1 // pred_fallthru
      _
    %1107 = vsyncpa [#allocation3], 1

// kernel: tpu_custom_call.1
$region0: #{tpu_custom_call.1}
  #allocation0 [shape = 'u32[]', space=smem, size = 0x4, offset = 0x4, fixed_abs, tag = 'smem constant byte address 0x4 - core index']
  #allocation1 [shape = 'u32[144,128]{1,0:T(1,128)}', space=vmem, size = 0x12000, scoped, tag = 'internal scratch']
  %s0 = inlined_call_operand.vmem [shape: bf16[128,7], index: 0, kind: input, shape index: {}]
  %s1 = inlined_call_operand.vmem [shape: f32[7,16], index: 1, kind: input, shape index: {}]
  %s2 = inlined_call_operand.vmem [shape: f32[1,16], index: 2, kind: input, shape index: {}]
  %s3 = inlined_call_operand.vmem [shape: bf16[16,128], index: 3, kind: input, shape index: {}]
  %s4 = inlined_call_operand.vmem [shape: f32[1,128], index: 4, kind: input, shape index: {}]
  %s5 = inlined_call_operand.hbm [shape: f32[16,128], index: 5, kind: output, shape index: {}]
  %s6 = sld [smem:[#allocation0]]
  $region30: #{tpu_custom_call.1} parent=0
    _
  %s8 = ssub.s32 1, %s6
  %s9 = scalar_select 0, %s8, %s6
  $region1: #{tpu_custom_call.1} parent=0
    #allocation2 [shape = 'u8[8192]{0}', space=vmem, size = 0x2000, scoped, tag = 'output window, operand 0, single buffered']
    #allocation3 [shape = 's32[1]{0}', space=sflag, size = 0x4, scoped, tag = 'scoped memory for tpu_custom_call.1']
    %10 = vsyncpa [#allocation3], 0
    // Predicated region
    $region2: #{tpu_custom_call.1} parent=1 // pred_check
      _
    $region3: #{tpu_custom_call.1} parent=1 // pred_check_branch
      %12 = sbr.rel (0) target = $region5
    $region4: #{tpu_custom_call.1} parent=1 // pred_region
      _
    $region5: #{tpu_custom_call.1} parent=1 // pred_fallthru
      _
    // Predicated region
    $region6: #{tpu_custom_call.1} parent=1 // pred_check
      _
    $region7: #{tpu_custom_call.1} parent=1 // pred_check_branch
      %14 = sbr.rel (0) target = $region9
    $region8: #{tpu_custom_call.1} parent=1 // pred_region
      _
    $region9: #{tpu_custom_call.1} parent=1 // pred_fallthru
      _
    // Predicated region
    $region10: #{tpu_custom_call.1} parent=1 // pred_check
      _
    $region11: #{tpu_custom_call.1} parent=1 // pred_check_branch
      %16 = sbr.rel (0) target = $region13
    $region12: #{tpu_custom_call.1} parent=1 // pred_region
      _
    $region13: #{tpu_custom_call.1} parent=1 // pred_fallthru
      _
    // Predicated region
    $region14: #{tpu_custom_call.1} parent=1 // pred_check
      _
    $region15: #{tpu_custom_call.1} parent=1 // pred_check_branch
      %18 = sbr.rel (0) target = $region17
    $region16: #{tpu_custom_call.1} parent=1 // pred_region
      _
    $region17: #{tpu_custom_call.1} parent=1 // pred_fallthru
      _
    // Predicated region
    $region18: #{tpu_custom_call.1} parent=1 // pred_check
      _
    $region19: #{tpu_custom_call.1} parent=1 // pred_check_branch
      %20 = sbr.rel (0) target = $region21
    $region20: #{tpu_custom_call.1} parent=1 // pred_region
      _
    $region21: #{tpu_custom_call.1} parent=1 // pred_fallthru
      _
    %v22 = vld [vmem:[%s0] sm:$0xf]
    %v23 = vld [vmem:[%s0 + $0x4] sm:$0xf]
    %v24 = vld [vmem:[%s0 + $0x8] sm:$0xf]
    %v25 = vld [vmem:[%s0 + $0xc] sm:$0xf]
    %v26 = vld [vmem:[%s0 + $0x10] sm:$0xf]
    %v27 = vld [vmem:[%s0 + $0x14] sm:$0xf]
    %v28 = vld [vmem:[%s0 + $0x18] sm:$0xf]
    %v29 = vld [vmem:[%s0 + $0x1c] sm:$0xf]
    %v30 = vld [vmem:[%s0 + $0x20] sm:$0xf]
    %v31 = vld [vmem:[%s0 + $0x24] sm:$0xf]
    %v32 = vld [vmem:[%s0 + $0x28] sm:$0xf]
    %v33 = vld [vmem:[%s0 + $0x2c] sm:$0xf]
    %v34 = vld [vmem:[%s0 + $0x30] sm:$0xf]
    %v35 = vld [vmem:[%s0 + $0x34] sm:$0xf]
    %v36 = vld [vmem:[%s0 + $0x38] sm:$0xf]
    %v37 = vld [vmem:[%s0 + $0x3c] sm:$0xf]
    %v38 = vld [vmem:[%s1] sm:$0x7f]
    %v39 = vld [vmem:[%s2] sm:$0x1]
    %v41 = vlaneseq
    %v42 = vshrl.u32 %v41, 7
    %v43 = vsub.s32 0, %v42
    %v44 = vrot.slane %v39, %v43
    %v46 = vunpack.c.l.bf16 %v22
    %v47 = vunpack.c.l.bf16 %v23
    %v48 = vunpack.c.l.bf16 %v24
    %v49 = vunpack.c.l.bf16 %v25
    %v50 = vunpack.c.l.bf16 %v26
    %v51 = vunpack.c.l.bf16 %v27
    %v52 = vunpack.c.l.bf16 %v28
    %v53 = vunpack.c.l.bf16 %v29
    %v54 = vunpack.c.l.bf16 %v30
    %v55 = vunpack.c.l.bf16 %v31
    %v56 = vunpack.c.l.bf16 %v32
    %v57 = vunpack.c.l.bf16 %v33
    %v58 = vunpack.c.l.bf16 %v34
    %v59 = vunpack.c.l.bf16 %v35
    %v60 = vunpack.c.l.bf16 %v36
    %v61 = vunpack.c.l.bf16 %v37
    %63 = vset.pattern.permute.xlu0 0
    %64 = vperm.xlu0 %63, %v46
    %v65 = vpop.permute.xlu0 %64
    %68 = vset.pattern.permute.xlu0 0
    %69 = vperm.xlu0 %68, %v47
    %v70 = vpop.permute.xlu0 %69
    %73 = vset.pattern.permute.xlu0 0
    %74 = vperm.xlu0 %73, %v48
    %v75 = vpop.permute.xlu0 %74
    %78 = vset.pattern.permute.xlu0 0
    %79 = vperm.xlu0 %78, %v49
    %v80 = vpop.permute.xlu0 %79
    %83 = vset.pattern.permute.xlu0 0
    %84 = vperm.xlu0 %83, %v50
    %v85 = vpop.permute.xlu0 %84
    %88 = vset.pattern.permute.xlu0 0
    %89 = vperm.xlu0 %88, %v51
    %v90 = vpop.permute.xlu0 %89
    %93 = vset.pattern.permute.xlu0 0
    %94 = vperm.xlu0 %93, %v52
    %v95 = vpop.permute.xlu0 %94
    %98 = vset.pattern.permute.xlu0 0
    %99 = vperm.xlu0 %98, %v53
    %v100 = vpop.permute.xlu0 %99
    %103 = vset.pattern.permute.xlu0 0
    %104 = vperm.xlu0 %103, %v54
    %v105 = vpop.permute.xlu0 %104
    %108 = vset.pattern.permute.xlu0 0
    %109 = vperm.xlu0 %108, %v55
    %v110 = vpop.permute.xlu0 %109
    %113 = vset.pattern.permute.xlu0 0
    %114 = vperm.xlu0 %113, %v56
    %v115 = vpop.permute.xlu0 %114
    %118 = vset.pattern.permute.xlu0 0
    %119 = vperm.xlu0 %118, %v57
    %v120 = vpop.permute.xlu0 %119
    %123 = vset.pattern.permute.xlu0 0
    %124 = vperm.xlu0 %123, %v58
    %v125 = vpop.permute.xlu0 %124
    %128 = vset.pattern.permute.xlu0 0
    %129 = vperm.xlu0 %128, %v59
    %v130 = vpop.permute.xlu0 %129
    %133 = vset.pattern.permute.xlu0 0
    %134 = vperm.xlu0 %133, %v60
    %v135 = vpop.permute.xlu0 %134
    %138 = vset.pattern.permute.xlu0 0
    %139 = vperm.xlu0 %138, %v61
    %v140 = vpop.permute.xlu0 %139
    %v142 = vlaneseq
    %v143 = vshrl.u32 %v142, 7
    %v144 = vsub.s32 0, %v143
    %v145 = vrot.slane %v38, %v144
    %v146 = vmul.f32 %v65, %v145
    %v147 = vmul.f32 %v70, %v145
    %v148 = vmul.f32 %v75, %v145
    %v149 = vmul.f32 %v80, %v145
    %v150 = vmul.f32 %v85, %v145
    %v151 = vmul.f32 %v90, %v145
    %v152 = vmul.f32 %v95, %v145
    %v153 = vmul.f32 %v100, %v145
    %v154 = vmul.f32 %v105, %v145
    %v155 = vmul.f32 %v110, %v145
    %v156 = vmul.f32 %v115, %v145
    %v157 = vmul.f32 %v120, %v145
    %v158 = vmul.f32 %v125, %v145
    %v159 = vmul.f32 %v130, %v145
    %v160 = vmul.f32 %v135, %v145
    %v161 = vmul.f32 %v140, %v145
    %v162 = vadd.f32 %v44, %v146
    %v163 = vadd.f32 %v44, %v147
    %v164 = vadd.f32 %v44, %v148
    %v165 = vadd.f32 %v44, %v149
    %v166 = vadd.f32 %v44, %v150
    %v167 = vadd.f32 %v44, %v151
    %v168 = vadd.f32 %v44, %v152
    %v169 = vadd.f32 %v44, %v153
    %v170 = vadd.f32 %v44, %v154
    %v171 = vadd.f32 %v44, %v155
    %v172 = vadd.f32 %v44, %v156
    %v173 = vadd.f32 %v44, %v157
    %v174 = vadd.f32 %v44, %v158
    %v175 = vadd.f32 %v44, %v159
    %v176 = vadd.f32 %v44, %v160
    %v177 = vadd.f32 %v44, %v161
    %178 = vset.pattern.permute.xlu0 1
    %179 = vperm.xlu0 %178, %v46
    %v180 = vpop.permute.xlu0 %179
    %182 = vset.pattern.permute.xlu0 1
    %183 = vperm.xlu0 %182, %v47
    %v184 = vpop.permute.xlu0 %183
    %186 = vset.pattern.permute.xlu0 1
    %187 = vperm.xlu0 %186, %v48
    %v188 = vpop.permute.xlu0 %187
    %190 = vset.pattern.permute.xlu0 1
    %191 = vperm.xlu0 %190, %v49
    %v192 = vpop.permute.xlu0 %191
    %194 = vset.pattern.permute.xlu0 1
    %195 = vperm.xlu0 %194, %v50
    %v196 = vpop.permute.xlu0 %195
    %198 = vset.pattern.permute.xlu0 1
    %199 = vperm.xlu0 %198, %v51
    %v200 = vpop.permute.xlu0 %199
    %202 = vset.pattern.permute.xlu0 1
    %203 = vperm.xlu0 %202, %v52
    %v204 = vpop.permute.xlu0 %203
    %206 = vset.pattern.permute.xlu0 1
    %207 = vperm.xlu0 %206, %v53
    %v208 = vpop.permute.xlu0 %207
    %210 = vset.pattern.permute.xlu0 1
    %211 = vperm.xlu0 %210, %v54
    %v212 = vpop.permute.xlu0 %211
    %214 = vset.pattern.permute.xlu0 1
    %215 = vperm.xlu0 %214, %v55
    %v216 = vpop.permute.xlu0 %215
    %218 = vset.pattern.permute.xlu0 1
    %219 = vperm.xlu0 %218, %v56
    %v220 = vpop.permute.xlu0 %219
    %222 = vset.pattern.permute.xlu0 1
    %223 = vperm.xlu0 %222, %v57
    %v224 = vpop.permute.xlu0 %223
    %226 = vset.pattern.permute.xlu0 1
    %227 = vperm.xlu0 %226, %v58
    %v228 = vpop.permute.xlu0 %227
    %230 = vset.pattern.permute.xlu0 1
    %231 = vperm.xlu0 %230, %v59
    %v232 = vpop.permute.xlu0 %231
    %234 = vset.pattern.permute.xlu0 1
    %235 = vperm.xlu0 %234, %v60
    %v236 = vpop.permute.xlu0 %235
    %238 = vset.pattern.permute.xlu0 1
    %239 = vperm.xlu0 %238, %v61
    %v240 = vpop.permute.xlu0 %239
    %v242 = vlaneseq
    %v243 = vshrl.u32 %v242, 7
    %v244 = vsub.s32 1, %v243
    %v245 = vrot.slane %v38, %v244
    %v246 = vmul.f32 %v180, %v245
    %v247 = vmul.f32 %v184, %v245
    %v248 = vmul.f32 %v188, %v245
    %v249 = vmul.f32 %v192, %v245
    %v250 = vmul.f32 %v196, %v245
    %v251 = vmul.f32 %v200, %v245
    %v252 = vmul.f32 %v204, %v245
    %v253 = vmul.f32 %v208, %v245
    %v254 = vmul.f32 %v212, %v245
    %v255 = vmul.f32 %v216, %v245
    %v256 = vmul.f32 %v220, %v245
    %v257 = vmul.f32 %v224, %v245
    %v258 = vmul.f32 %v228, %v245
    %v259 = vmul.f32 %v232, %v245
    %v260 = vmul.f32 %v236, %v245
    %v261 = vmul.f32 %v240, %v245
    %v262 = vadd.f32 %v162, %v246
    %v263 = vadd.f32 %v163, %v247
    %v264 = vadd.f32 %v164, %v248
    %v265 = vadd.f32 %v165, %v249
    %v266 = vadd.f32 %v166, %v250
    %v267 = vadd.f32 %v167, %v251
    %v268 = vadd.f32 %v168, %v252
    %v269 = vadd.f32 %v169, %v253
    %v270 = vadd.f32 %v170, %v254
    %v271 = vadd.f32 %v171, %v255
    %v272 = vadd.f32 %v172, %v256
    %v273 = vadd.f32 %v173, %v257
    %v274 = vadd.f32 %v174, %v258
    %v275 = vadd.f32 %v175, %v259
    %v276 = vadd.f32 %v176, %v260
    %v277 = vadd.f32 %v177, %v261
    %278 = vset.pattern.permute.xlu0 2
    %279 = vperm.xlu0 %278, %v46
    %v280 = vpop.permute.xlu0 %279
    %282 = vset.pattern.permute.xlu0 2
    %283 = vperm.xlu0 %282, %v47
    %v284 = vpop.permute.xlu0 %283
    %286 = vset.pattern.permute.xlu0 2
    %287 = vperm.xlu0 %286, %v48
    %v288 = vpop.permute.xlu0 %287
    %290 = vset.pattern.permute.xlu0 2
    %291 = vperm.xlu0 %290, %v49
    %v292 = vpop.permute.xlu0 %291
    %294 = vset.pattern.permute.xlu0 2
    %295 = vperm.xlu0 %294, %v50
    %v296 = vpop.permute.xlu0 %295
    %298 = vset.pattern.permute.xlu0 2
    %299 = vperm.xlu0 %298, %v51
    %v300 = vpop.permute.xlu0 %299
    %302 = vset.pattern.permute.xlu0 2
    %303 = vperm.xlu0 %302, %v52
    %v304 = vpop.permute.xlu0 %303
    %306 = vset.pattern.permute.xlu0 2
    %307 = vperm.xlu0 %306, %v53
    %v308 = vpop.permute.xlu0 %307
    %310 = vset.pattern.permute.xlu0 2
    %311 = vperm.xlu0 %310, %v54
    %v312 = vpop.permute.xlu0 %311
    %314 = vset.pattern.permute.xlu0 2
    %315 = vperm.xlu0 %314, %v55
    %v316 = vpop.permute.xlu0 %315
    %318 = vset.pattern.permute.xlu0 2
    %319 = vperm.xlu0 %318, %v56
    %v320 = vpop.permute.xlu0 %319
    %322 = vset.pattern.permute.xlu0 2
    %323 = vperm.xlu0 %322, %v57
    %v324 = vpop.permute.xlu0 %323
    %326 = vset.pattern.permute.xlu0 2
    %327 = vperm.xlu0 %326, %v58
    %v328 = vpop.permute.xlu0 %327
    %330 = vset.pattern.permute.xlu0 2
    %331 = vperm.xlu0 %330, %v59
    %v332 = vpop.permute.xlu0 %331
    %334 = vset.pattern.permute.xlu0 2
    %335 = vperm.xlu0 %334, %v60
    %v336 = vpop.permute.xlu0 %335
    %338 = vset.pattern.permute.xlu0 2
    %339 = vperm.xlu0 %338, %v61
    %v340 = vpop.permute.xlu0 %339
    %v342 = vlaneseq
    %v343 = vshrl.u32 %v342, 7
    %v344 = vsub.s32 2, %v343
    %v345 = vrot.slane %v38, %v344
    %v346 = vmul.f32 %v280, %v345
    %v347 = vmul.f32 %v284, %v345
    %v348 = vmul.f32 %v288, %v345
    %v349 = vmul.f32 %v292, %v345
    %v350 = vmul.f32 %v296, %v345
    %v351 = vmul.f32 %v300, %v345
    %v352 = vmul.f32 %v304, %v345
    %v353 = vmul.f32 %v308, %v345
    %v354 = vmul.f32 %v312, %v345
    %v355 = vmul.f32 %v316, %v345
    %v356 = vmul.f32 %v320, %v345
    %v357 = vmul.f32 %v324, %v345
    %v358 = vmul.f32 %v328, %v345
    %v359 = vmul.f32 %v332, %v345
    %v360 = vmul.f32 %v336, %v345
    %v361 = vmul.f32 %v340, %v345
    %v362 = vadd.f32 %v262, %v346
    %v363 = vadd.f32 %v263, %v347
    %v364 = vadd.f32 %v264, %v348
    %v365 = vadd.f32 %v265, %v349
    %v366 = vadd.f32 %v266, %v350
    %v367 = vadd.f32 %v267, %v351
    %v368 = vadd.f32 %v268, %v352
    %v369 = vadd.f32 %v269, %v353
    %v370 = vadd.f32 %v270, %v354
    %v371 = vadd.f32 %v271, %v355
    %v372 = vadd.f32 %v272, %v356
    %v373 = vadd.f32 %v273, %v357
    %v374 = vadd.f32 %v274, %v358
    %v375 = vadd.f32 %v275, %v359
    %v376 = vadd.f32 %v276, %v360
    %v377 = vadd.f32 %v277, %v361
    %378 = vset.pattern.permute.xlu0 3
    %379 = vperm.xlu0 %378, %v46
    %v380 = vpop.permute.xlu0 %379
    %382 = vset.pattern.permute.xlu0 3
    %383 = vperm.xlu0 %382, %v47
    %v384 = vpop.permute.xlu0 %383
    %386 = vset.pattern.permute.xlu0 3
    %387 = vperm.xlu0 %386, %v48
    %v388 = vpop.permute.xlu0 %387
    %390 = vset.pattern.permute.xlu0 3
    %391 = vperm.xlu0 %390, %v49
    %v392 = vpop.permute.xlu0 %391
    %394 = vset.pattern.permute.xlu0 3
    %395 = vperm.xlu0 %394, %v50
    %v396 = vpop.permute.xlu0 %395
    %398 = vset.pattern.permute.xlu0 3
    %399 = vperm.xlu0 %398, %v51
    %v400 = vpop.permute.xlu0 %399
    %402 = vset.pattern.permute.xlu0 3
    %403 = vperm.xlu0 %402, %v52
    %v404 = vpop.permute.xlu0 %403
    %406 = vset.pattern.permute.xlu0 3
    %407 = vperm.xlu0 %406, %v53
    %v408 = vpop.permute.xlu0 %407
    %410 = vset.pattern.permute.xlu0 3
    %411 = vperm.xlu0 %410, %v54
    %v412 = vpop.permute.xlu0 %411
    %414 = vset.pattern.permute.xlu0 3
    %415 = vperm.xlu0 %414, %v55
    %v416 = vpop.permute.xlu0 %415
    %418 = vset.pattern.permute.xlu0 3
    %419 = vperm.xlu0 %418, %v56
    %v420 = vpop.permute.xlu0 %419
    %422 = vset.pattern.permute.xlu0 3
    %423 = vperm.xlu0 %422, %v57
    %v424 = vpop.permute.xlu0 %423
    %426 = vset.pattern.permute.xlu0 3
    %427 = vperm.xlu0 %426, %v58
    %v428 = vpop.permute.xlu0 %427
    %430 = vset.pattern.permute.xlu0 3
    %431 = vperm.xlu0 %430, %v59
    %v432 = vpop.permute.xlu0 %431
    %434 = vset.pattern.permute.xlu0 3
    %435 = vperm.xlu0 %434, %v60
    %v436 = vpop.permute.xlu0 %435
    %438 = vset.pattern.permute.xlu0 3
    %439 = vperm.xlu0 %438, %v61
    %v440 = vpop.permute.xlu0 %439
    %v442 = vlaneseq
    %v443 = vshrl.u32 %v442, 7
    %v444 = vsub.s32 3, %v443
    %v445 = vrot.slane %v38, %v444
    %v446 = vmul.f32 %v380, %v445
    %v447 = vmul.f32 %v384, %v445
    %v448 = vmul.f32 %v388, %v445
    %v449 = vmul.f32 %v392, %v445
    %v450 = vmul.f32 %v396, %v445
    %v451 = vmul.f32 %v400, %v445
    %v452 = vmul.f32 %v404, %v445
    %v453 = vmul.f32 %v408, %v445
    %v454 = vmul.f32 %v412, %v445
    %v455 = vmul.f32 %v416, %v445
    %v456 = vmul.f32 %v420, %v445
    %v457 = vmul.f32 %v424, %v445
    %v458 = vmul.f32 %v428, %v445
    %v459 = vmul.f32 %v432, %v445
    %v460 = vmul.f32 %v436, %v445
    %v461 = vmul.f32 %v440, %v445
    %v462 = vadd.f32 %v362, %v446
    %v463 = vadd.f32 %v363, %v447
    %v464 = vadd.f32 %v364, %v448
    %v465 = vadd.f32 %v365, %v449
    %v466 = vadd.f32 %v366, %v450
    %v467 = vadd.f32 %v367, %v451
    %v468 = vadd.f32 %v368, %v452
    %v469 = vadd.f32 %v369, %v453
    %v470 = vadd.f32 %v370, %v454
    %v471 = vadd.f32 %v371, %v455
    %v472 = vadd.f32 %v372, %v456
    %v473 = vadd.f32 %v373, %v457
    %v474 = vadd.f32 %v374, %v458
    %v475 = vadd.f32 %v375, %v459
    %v476 = vadd.f32 %v376, %v460
    %v477 = vadd.f32 %v377, %v461
    %478 = vset.pattern.permute.xlu0 4
    %479 = vperm.xlu0 %478, %v46
    %v480 = vpop.permute.xlu0 %479
    %482 = vset.pattern.permute.xlu0 4
    %483 = vperm.xlu0 %482, %v47
    %v484 = vpop.permute.xlu0 %483
    %486 = vset.pattern.permute.xlu0 4
    %487 = vperm.xlu0 %486, %v48
    %v488 = vpop.permute.xlu0 %487
    %490 = vset.pattern.permute.xlu0 4
    %491 = vperm.xlu0 %490, %v49
    %v492 = vpop.permute.xlu0 %491
    %494 = vset.pattern.permute.xlu0 4
    %495 = vperm.xlu0 %494, %v50
    %v496 = vpop.permute.xlu0 %495
    %498 = vset.pattern.permute.xlu0 4
    %499 = vperm.xlu0 %498, %v51
    %v500 = vpop.permute.xlu0 %499
    %502 = vset.pattern.permute.xlu0 4
    %503 = vperm.xlu0 %502, %v52
    %v504 = vpop.permute.xlu0 %503
    %506 = vset.pattern.permute.xlu0 4
    %507 = vperm.xlu0 %506, %v53
    %v508 = vpop.permute.xlu0 %507
    %510 = vset.pattern.permute.xlu0 4
    %511 = vperm.xlu0 %510, %v54
    %v512 = vpop.permute.xlu0 %511
    %514 = vset.pattern.permute.xlu0 4
    %515 = vperm.xlu0 %514, %v55
    %v516 = vpop.permute.xlu0 %515
    %518 = vset.pattern.permute.xlu0 4
    %519 = vperm.xlu0 %518, %v56
    %v520 = vpop.permute.xlu0 %519
    %522 = vset.pattern.permute.xlu0 4
    %523 = vperm.xlu0 %522, %v57
    %v524 = vpop.permute.xlu0 %523
    %526 = vset.pattern.permute.xlu0 4
    %527 = vperm.xlu0 %526, %v58
    %v528 = vpop.permute.xlu0 %527
    %530 = vset.pattern.permute.xlu0 4
    %531 = vperm.xlu0 %530, %v59
    %v532 = vpop.permute.xlu0 %531
    %534 = vset.pattern.permute.xlu0 4
    %535 = vperm.xlu0 %534, %v60
    %v536 = vpop.permute.xlu0 %535
    %538 = vset.pattern.permute.xlu0 4
    %539 = vperm.xlu0 %538, %v61
    %v540 = vpop.permute.xlu0 %539
    %v542 = vlaneseq
    %v543 = vshrl.u32 %v542, 7
    %v544 = vsub.s32 4, %v543
    %v545 = vrot.slane %v38, %v544
    %v546 = vmul.f32 %v480, %v545
    %v547 = vmul.f32 %v484, %v545
    %v548 = vmul.f32 %v488, %v545
    %v549 = vmul.f32 %v492, %v545
    %v550 = vmul.f32 %v496, %v545
    %v551 = vmul.f32 %v500, %v545
    %v552 = vmul.f32 %v504, %v545
    %v553 = vmul.f32 %v508, %v545
    %v554 = vmul.f32 %v512, %v545
    %v555 = vmul.f32 %v516, %v545
    %v556 = vmul.f32 %v520, %v545
    %v557 = vmul.f32 %v524, %v545
    %v558 = vmul.f32 %v528, %v545
    %v559 = vmul.f32 %v532, %v545
    %v560 = vmul.f32 %v536, %v545
    %v561 = vmul.f32 %v540, %v545
    %v562 = vadd.f32 %v462, %v546
    %v563 = vadd.f32 %v463, %v547
    %v564 = vadd.f32 %v464, %v548
    %v565 = vadd.f32 %v465, %v549
    %v566 = vadd.f32 %v466, %v550
    %v567 = vadd.f32 %v467, %v551
    %v568 = vadd.f32 %v468, %v552
    %v569 = vadd.f32 %v469, %v553
    %v570 = vadd.f32 %v470, %v554
    %v571 = vadd.f32 %v471, %v555
    %v572 = vadd.f32 %v472, %v556
    %v573 = vadd.f32 %v473, %v557
    %v574 = vadd.f32 %v474, %v558
    %v575 = vadd.f32 %v475, %v559
    %v576 = vadd.f32 %v476, %v560
    %v577 = vadd.f32 %v477, %v561
    %578 = vset.pattern.permute.xlu0 5
    %579 = vperm.xlu0 %578, %v46
    %v580 = vpop.permute.xlu0 %579
    %582 = vset.pattern.permute.xlu0 5
    %583 = vperm.xlu0 %582, %v47
    %v584 = vpop.permute.xlu0 %583
    %586 = vset.pattern.permute.xlu0 5
    %587 = vperm.xlu0 %586, %v48
    %v588 = vpop.permute.xlu0 %587
    %590 = vset.pattern.permute.xlu0 5
    %591 = vperm.xlu0 %590, %v49
    %v592 = vpop.permute.xlu0 %591
    %594 = vset.pattern.permute.xlu0 5
    %595 = vperm.xlu0 %594, %v50
    %v596 = vpop.permute.xlu0 %595
    %598 = vset.pattern.permute.xlu0 5
    %599 = vperm.xlu0 %598, %v51
    %v600 = vpop.permute.xlu0 %599
    %602 = vset.pattern.permute.xlu0 5
    %603 = vperm.xlu0 %602, %v52
    %v604 = vpop.permute.xlu0 %603
    %606 = vset.pattern.permute.xlu0 5
    %607 = vperm.xlu0 %606, %v53
    %v608 = vpop.permute.xlu0 %607
    %610 = vset.pattern.permute.xlu0 5
    %611 = vperm.xlu0 %610, %v54
    %v612 = vpop.permute.xlu0 %611
    %614 = vset.pattern.permute.xlu0 5
    %615 = vperm.xlu0 %614, %v55
    %v616 = vpop.permute.xlu0 %615
    %618 = vset.pattern.permute.xlu0 5
    %619 = vperm.xlu0 %618, %v56
    %v620 = vpop.permute.xlu0 %619
    %622 = vset.pattern.permute.xlu0 5
    %623 = vperm.xlu0 %622, %v57
    %v624 = vpop.permute.xlu0 %623
    %626 = vset.pattern.permute.xlu0 5
    %627 = vperm.xlu0 %626, %v58
    %v628 = vpop.permute.xlu0 %627
    %630 = vset.pattern.permute.xlu0 5
    %631 = vperm.xlu0 %630, %v59
    %v632 = vpop.permute.xlu0 %631
    %634 = vset.pattern.permute.xlu0 5
    %635 = vperm.xlu0 %634, %v60
    %v636 = vpop.permute.xlu0 %635
    %638 = vset.pattern.permute.xlu0 5
    %639 = vperm.xlu0 %638, %v61
    %v640 = vpop.permute.xlu0 %639
    %v642 = vlaneseq
    %v643 = vshrl.u32 %v642, 7
    %v644 = vsub.s32 5, %v643
    %v645 = vrot.slane %v38, %v644
    %v646 = vmul.f32 %v580, %v645
    %v647 = vmul.f32 %v584, %v645
    %v648 = vmul.f32 %v588, %v645
    %v649 = vmul.f32 %v592, %v645
    %v650 = vmul.f32 %v596, %v645
    %v651 = vmul.f32 %v600, %v645
    %v652 = vmul.f32 %v604, %v645
    %v653 = vmul.f32 %v608, %v645
    %v654 = vmul.f32 %v612, %v645
    %v655 = vmul.f32 %v616, %v645
    %v656 = vmul.f32 %v620, %v645
    %v657 = vmul.f32 %v624, %v645
    %v658 = vmul.f32 %v628, %v645
    %v659 = vmul.f32 %v632, %v645
    %v660 = vmul.f32 %v636, %v645
    %v661 = vmul.f32 %v640, %v645
    %v662 = vadd.f32 %v562, %v646
    %v663 = vadd.f32 %v563, %v647
    %v664 = vadd.f32 %v564, %v648
    %v665 = vadd.f32 %v565, %v649
    %v666 = vadd.f32 %v566, %v650
    %v667 = vadd.f32 %v567, %v651
    %v668 = vadd.f32 %v568, %v652
    %v669 = vadd.f32 %v569, %v653
    %v670 = vadd.f32 %v570, %v654
    %v671 = vadd.f32 %v571, %v655
    %v672 = vadd.f32 %v572, %v656
    %v673 = vadd.f32 %v573, %v657
    %v674 = vadd.f32 %v574, %v658
    %v675 = vadd.f32 %v575, %v659
    %v676 = vadd.f32 %v576, %v660
    %v677 = vadd.f32 %v577, %v661
    %678 = vset.pattern.permute.xlu0 6
    %679 = vperm.xlu0 %678, %v46
    %v680 = vpop.permute.xlu0 %679
    %682 = vset.pattern.permute.xlu0 6
    %683 = vperm.xlu0 %682, %v47
    %v684 = vpop.permute.xlu0 %683
    %686 = vset.pattern.permute.xlu0 6
    %687 = vperm.xlu0 %686, %v48
    %v688 = vpop.permute.xlu0 %687
    %690 = vset.pattern.permute.xlu0 6
    %691 = vperm.xlu0 %690, %v49
    %v692 = vpop.permute.xlu0 %691
    %694 = vset.pattern.permute.xlu0 6
    %695 = vperm.xlu0 %694, %v50
    %v696 = vpop.permute.xlu0 %695
    %698 = vset.pattern.permute.xlu0 6
    %699 = vperm.xlu0 %698, %v51
    %v700 = vpop.permute.xlu0 %699
    %702 = vset.pattern.permute.xlu0 6
    %703 = vperm.xlu0 %702, %v52
    %v704 = vpop.permute.xlu0 %703
    %706 = vset.pattern.permute.xlu0 6
    %707 = vperm.xlu0 %706, %v53
    %v708 = vpop.permute.xlu0 %707
    %710 = vset.pattern.permute.xlu0 6
    %711 = vperm.xlu0 %710, %v54
    %v712 = vpop.permute.xlu0 %711
    %714 = vset.pattern.permute.xlu0 6
    %715 = vperm.xlu0 %714, %v55
    %v716 = vpop.permute.xlu0 %715
    %718 = vset.pattern.permute.xlu0 6
    %719 = vperm.xlu0 %718, %v56
    %v720 = vpop.permute.xlu0 %719
    %722 = vset.pattern.permute.xlu0 6
    %723 = vperm.xlu0 %722, %v57
    %v724 = vpop.permute.xlu0 %723
    %726 = vset.pattern.permute.xlu0 6
    %727 = vperm.xlu0 %726, %v58
    %v728 = vpop.permute.xlu0 %727
    %730 = vset.pattern.permute.xlu0 6
    %731 = vperm.xlu0 %730, %v59
    %v732 = vpop.permute.xlu0 %731
    %734 = vset.pattern.permute.xlu0 6
    %735 = vperm.xlu0 %734, %v60
    %v736 = vpop.permute.xlu0 %735
    %738 = vset.pattern.permute.xlu0 6
    %739 = vperm.xlu0 %738, %v61
    %v740 = vpop.permute.xlu0 %739
    %v742 = vlaneseq
    %v743 = vshrl.u32 %v742, 7
    %v744 = vsub.s32 6, %v743
    %v745 = vrot.slane %v38, %v744
    %v746 = vmul.f32 %v680, %v745
    %v747 = vmul.f32 %v684, %v745
    %v748 = vmul.f32 %v688, %v745
    %v749 = vmul.f32 %v692, %v745
    %v750 = vmul.f32 %v696, %v745
    %v751 = vmul.f32 %v700, %v745
    %v752 = vmul.f32 %v704, %v745
    %v753 = vmul.f32 %v708, %v745
    %v754 = vmul.f32 %v712, %v745
    %v755 = vmul.f32 %v716, %v745
    %v756 = vmul.f32 %v720, %v745
    %v757 = vmul.f32 %v724, %v745
    %v758 = vmul.f32 %v728, %v745
    %v759 = vmul.f32 %v732, %v745
    %v760 = vmul.f32 %v736, %v745
    %v761 = vmul.f32 %v740, %v745
    %v762 = vadd.f32 %v662, %v746
    %v763 = vadd.f32 %v663, %v747
    %v764 = vadd.f32 %v664, %v748
    %v765 = vadd.f32 %v665, %v749
    %v766 = vadd.f32 %v666, %v750
    %v767 = vadd.f32 %v667, %v751
    %v768 = vadd.f32 %v668, %v752
    %v769 = vadd.f32 %v669, %v753
    %v770 = vadd.f32 %v670, %v754
    %v771 = vadd.f32 %v671, %v755
    %v772 = vadd.f32 %v672, %v756
    %v773 = vadd.f32 %v673, %v757
    %v774 = vadd.f32 %v674, %v758
    %v775 = vadd.f32 %v675, %v759
    %v776 = vadd.f32 %v676, %v760
    %v777 = vadd.f32 %v677, %v761
    %v778 = vmax.f32 %v762, 0.0
    %v779 = vmax.f32 %v763, 0.0
    %v780 = vmax.f32 %v764, 0.0
    %v781 = vmax.f32 %v765, 0.0
    %v782 = vmax.f32 %v766, 0.0
    %v783 = vmax.f32 %v767, 0.0
    %v784 = vmax.f32 %v768, 0.0
    %v785 = vmax.f32 %v769, 0.0
    %v786 = vmax.f32 %v770, 0.0
    %v787 = vmax.f32 %v771, 0.0
    %v788 = vmax.f32 %v772, 0.0
    %v789 = vmax.f32 %v773, 0.0
    %v790 = vmax.f32 %v774, 0.0
    %v791 = vmax.f32 %v775, 0.0
    %v792 = vmax.f32 %v776, 0.0
    %v793 = vmax.f32 %v777, 0.0
    %v794 = vpack.c.bf16 %v779, %v778
    %v795 = vpack.c.bf16 %v781, %v780
    %v796 = vpack.c.bf16 %v783, %v782
    %v797 = vpack.c.bf16 %v785, %v784
    %v798 = vpack.c.bf16 %v787, %v786
    %v799 = vpack.c.bf16 %v789, %v788
    %v800 = vpack.c.bf16 %v791, %v790
    %v801 = vpack.c.bf16 %v793, %v792
    %v802 = vld [vmem:[%s3] sm:$0xf]
    %v803 = vld [vmem:[%s3 + $0x4] sm:$0xf]
    %v804 = vld [vmem:[%s4] sm:$0x1]
    %v806 = vlaneseq
    %v807 = vshrl.u32 %v806, 7
    %v808 = vsub.s32 0, %v807
    %v809 = vrot.slane %v804, %v808
    %v813 = vunpack.c.l.b16 %v802
    %v814 = vunpack.c.l.b16 %v803
    %v815 = vpack.c.b16 %v814, %v813
    %vm817 = vcmask 130048
    %v819 = vsel %vm817, %v794, 0
    %v822 = vsel %vm817, %v795, 0
    %v825 = vsel %vm817, %v796, 0
    %v828 = vsel %vm817, %v797, 0
    %v831 = vsel %vm817, %v798, 0
    %v834 = vsel %vm817, %v799, 0
    %v837 = vsel %vm817, %v800, 0
    %v840 = vsel %vm817, %v801, 0
    %842 = vmatprep.subr.bf16.mxu0 0
    %843 = vmatpush1.bf16.msra.mxu0 %v815
    %844 = vmatprep.subr.bf16.mxu0 0
    %845 = vmatpush1.bf16.msra.mxu0 0
    %846 = vmatprep.subr.bf16.mxu0 0
    %847 = vmatpush1.bf16.msra.mxu0 0
    %848 = vmatprep.subr.bf16.mxu0 0
    %849 = vmatpush1.bf16.msra.mxu0 0
    %850 = vmatprep.subr.bf16.mxu0 0
    %851 = vmatpush1.bf16.msra.mxu0 0
    %852 = vmatprep.subr.bf16.mxu0 0
    %853 = vmatpush1.bf16.msra.mxu0 0
    %854 = vmatprep.subr.bf16.mxu0 0
    %855 = vmatpush1.bf16.msra.mxu0 0
    %856 = vmatprep.subr.bf16.mxu0 0
    %857 = vmatpush1.bf16.msra.mxu0 0
    %858 = vmatprep.subr.bf16.mxu0 0
    %859 = vmatpush1.bf16.msra.mxu0 0
    %860 = vmatprep.subr.bf16.mxu0 0
    %861 = vmatpush1.bf16.msra.mxu0 0
    %862 = vmatprep.subr.bf16.mxu0 0
    %863 = vmatpush1.bf16.msra.mxu0 0
    %864 = vmatprep.subr.bf16.mxu0 0
    %865 = vmatpush1.bf16.msra.mxu0 0
    %866 = vmatprep.subr.bf16.mxu0 0
    %867 = vmatpush1.bf16.msra.mxu0 0
    %868 = vmatprep.subr.bf16.mxu0 0
    %869 = vmatpush1.bf16.msra.mxu0 0
    %870 = vmatprep.subr.bf16.mxu0 0
    %871 = vmatpush1.bf16.msra.mxu0 0
    %872 = vmatprep.subr.bf16.mxu0 0
    %873 = vmatpush1.bf16.msra.mxu0 0
    %874 = vmatprep.mubr.bf16.mxu0 0
    %875 = vmatmul.mubr.bf16.gmra.mrb[0].mxu0 %v819
    %v876 = vpop.f32.mrb[0].mxu0
    %v877 = vadd.f32 %v809, %v876
    %v878 = vpop.f32.mrb[0].mxu0
    %v879 = vpop.f32.mrb[0].mxu0
    %v880 = vadd.f32 %v809, %v879
    %v881 = vpop.f32.mrb[0].mxu0
    %882 = vmatprep.mubr.bf16.mxu0 0
    %883 = vmatmul.mubr.bf16.gmra.mrb[0].mxu0 %v822
    %v884 = vpop.f32.mrb[0].mxu0
    %v885 = vadd.f32 %v809, %v884
    %v886 = vpop.f32.mrb[0].mxu0
    %v887 = vpop.f32.mrb[0].mxu0
    %v888 = vadd.f32 %v809, %v887
    %v889 = vpop.f32.mrb[0].mxu0
    %890 = vmatprep.mubr.bf16.mxu0 0
    %891 = vmatmul.mubr.bf16.gmra.mrb[0].mxu0 %v825
    %v892 = vpop.f32.mrb[0].mxu0
    %v893 = vadd.f32 %v809, %v892
    %v894 = vpop.f32.mrb[0].mxu0
    %v895 = vpop.f32.mrb[0].mxu0
    %v896 = vadd.f32 %v809, %v895
    %v897 = vpop.f32.mrb[0].mxu0
    %898 = vmatprep.mubr.bf16.mxu0 0
    %899 = vmatmul.mubr.bf16.gmra.mrb[0].mxu0 %v828
    %v900 = vpop.f32.mrb[0].mxu0
    %v901 = vadd.f32 %v809, %v900
    %v902 = vpop.f32.mrb[0].mxu0
    %v903 = vpop.f32.mrb[0].mxu0
    %v904 = vadd.f32 %v809, %v903
    %v905 = vpop.f32.mrb[0].mxu0
    %906 = vmatprep.mubr.bf16.mxu0 0
    %907 = vmatmul.mubr.bf16.gmra.mrb[0].mxu0 %v831
    %v908 = vpop.f32.mrb[0].mxu0
    %v909 = vadd.f32 %v809, %v908
    %v910 = vpop.f32.mrb[0].mxu0
    %v911 = vpop.f32.mrb[0].mxu0
    %v912 = vadd.f32 %v809, %v911
    %v913 = vpop.f32.mrb[0].mxu0
    %914 = vmatprep.mubr.bf16.mxu0 0
    %915 = vmatmul.mubr.bf16.gmra.mrb[0].mxu0 %v834
    %v916 = vpop.f32.mrb[0].mxu0
    %v917 = vadd.f32 %v809, %v916
    %v918 = vpop.f32.mrb[0].mxu0
    %v919 = vpop.f32.mrb[0].mxu0
    %v920 = vadd.f32 %v809, %v919
    %v921 = vpop.f32.mrb[0].mxu0
    %922 = vmatprep.mubr.bf16.mxu0 0
    %923 = vmatmul.mubr.bf16.gmra.mrb[0].mxu0 %v837
    %v924 = vpop.f32.mrb[0].mxu0
    %v925 = vadd.f32 %v809, %v924
    %v926 = vpop.f32.mrb[0].mxu0
    %v927 = vpop.f32.mrb[0].mxu0
    %v928 = vadd.f32 %v809, %v927
    %v929 = vpop.f32.mrb[0].mxu0
    %930 = vmatprep.mubr.bf16.mxu0 0
    %931 = vmatmul.mubr.bf16.gmra.mrb[0].mxu0 %v840
    %v932 = vpop.f32.mrb[0].mxu0
    %v933 = vadd.f32 %v809, %v932
    %v934 = vpop.f32.mrb[0].mxu0
    %v935 = vpop.f32.mrb[0].mxu0
    %v936 = vadd.f32 %v809, %v935
    %v937 = vpop.f32.mrb[0].mxu0
    %938 = vdwg.mxu0
    %v939 = vmax.f32 %v877, 0.0
    %v940 = vmax.f32 %v880, 0.0
    %v941 = vmax.f32 %v885, 0.0
    %v942 = vmax.f32 %v888, 0.0
    %v943 = vmax.f32 %v893, 0.0
    %v944 = vmax.f32 %v896, 0.0
    %v945 = vmax.f32 %v901, 0.0
    %v946 = vmax.f32 %v904, 0.0
    %v947 = vmax.f32 %v909, 0.0
    %v948 = vmax.f32 %v912, 0.0
    %v949 = vmax.f32 %v917, 0.0
    %v950 = vmax.f32 %v920, 0.0
    %v951 = vmax.f32 %v925, 0.0
    %v952 = vmax.f32 %v928, 0.0
    %v953 = vmax.f32 %v933, 0.0
    %v954 = vmax.f32 %v936, 0.0
    %v955 = vrot.slane %v939, 4
    %v956 = vmax.f32 %v939, %v955
    %v957 = vrot.slane %v956, 2
    %v958 = vmax.f32 %v956, %v957
    %v959 = vrot.slane %v958, 1
    %v960 = vmax.f32 %v958, %v959
    %v961 = vrot.slane %v940, 4
    %v962 = vmax.f32 %v940, %v961
    %v963 = vrot.slane %v962, 2
    %v964 = vmax.f32 %v962, %v963
    %v965 = vrot.slane %v964, 1
    %v966 = vmax.f32 %v964, %v965
    %v967 = vrot.slane %v941, 4
    %v968 = vmax.f32 %v941, %v967
    %v969 = vrot.slane %v968, 2
    %v970 = vmax.f32 %v968, %v969
    %v971 = vrot.slane %v970, 1
    %v972 = vmax.f32 %v970, %v971
    %v973 = vrot.slane %v942, 4
    %v974 = vmax.f32 %v942, %v973
    %v975 = vrot.slane %v974, 2
    %v976 = vmax.f32 %v974, %v975
    %v977 = vrot.slane %v976, 1
    %v978 = vmax.f32 %v976, %v977
    %v979 = vrot.slane %v943, 4
    %v980 = vmax.f32 %v943, %v979
    %v981 = vrot.slane %v980, 2
    %v982 = vmax.f32 %v980, %v981
    %v983 = vrot.slane %v982, 1
    %v984 = vmax.f32 %v982, %v983
    %v985 = vrot.slane %v944, 4
    %v986 = vmax.f32 %v944, %v985
    %v987 = vrot.slane %v986, 2
    %v988 = vmax.f32 %v986, %v987
    %v989 = vrot.slane %v988, 1
    %v990 = vmax.f32 %v988, %v989
    %v991 = vrot.slane %v945, 4
    %v992 = vmax.f32 %v945, %v991
    %v993 = vrot.slane %v992, 2
    %v994 = vmax.f32 %v992, %v993
    %v995 = vrot.slane %v994, 1
    %v996 = vmax.f32 %v994, %v995
    %v997 = vrot.slane %v946, 4
    %v998 = vmax.f32 %v946, %v997
    %v999 = vrot.slane %v998, 2
    %v1000 = vmax.f32 %v998, %v999
    %v1001 = vrot.slane %v1000, 1
    %v1002 = vmax.f32 %v1000, %v1001
    %v1003 = vrot.slane %v947, 4
    %v1004 = vmax.f32 %v947, %v1003
    %v1005 = vrot.slane %v1004, 2
    %v1006 = vmax.f32 %v1004, %v1005
    %v1007 = vrot.slane %v1006, 1
    %v1008 = vmax.f32 %v1006, %v1007
    %v1009 = vrot.slane %v948, 4
    %v1010 = vmax.f32 %v948, %v1009
    %v1011 = vrot.slane %v1010, 2
    %v1012 = vmax.f32 %v1010, %v1011
    %v1013 = vrot.slane %v1012, 1
    %v1014 = vmax.f32 %v1012, %v1013
    %v1015 = vrot.slane %v949, 4
    %v1016 = vmax.f32 %v949, %v1015
    %v1017 = vrot.slane %v1016, 2
    %v1018 = vmax.f32 %v1016, %v1017
    %v1019 = vrot.slane %v1018, 1
    %v1020 = vmax.f32 %v1018, %v1019
    %v1021 = vrot.slane %v950, 4
    %v1022 = vmax.f32 %v950, %v1021
    %v1023 = vrot.slane %v1022, 2
    %v1024 = vmax.f32 %v1022, %v1023
    %v1025 = vrot.slane %v1024, 1
    %v1026 = vmax.f32 %v1024, %v1025
    %v1027 = vrot.slane %v951, 4
    %v1028 = vmax.f32 %v951, %v1027
    %v1029 = vrot.slane %v1028, 2
    %v1030 = vmax.f32 %v1028, %v1029
    %v1031 = vrot.slane %v1030, 1
    %v1032 = vmax.f32 %v1030, %v1031
    %v1033 = vrot.slane %v952, 4
    %v1034 = vmax.f32 %v952, %v1033
    %v1035 = vrot.slane %v1034, 2
    %v1036 = vmax.f32 %v1034, %v1035
    %v1037 = vrot.slane %v1036, 1
    %v1038 = vmax.f32 %v1036, %v1037
    %v1039 = vrot.slane %v953, 4
    %v1040 = vmax.f32 %v953, %v1039
    %v1041 = vrot.slane %v1040, 2
    %v1042 = vmax.f32 %v1040, %v1041
    %v1043 = vrot.slane %v1042, 1
    %v1044 = vmax.f32 %v1042, %v1043
    %v1045 = vrot.slane %v954, 4
    %v1046 = vmax.f32 %v954, %v1045
    %v1047 = vrot.slane %v1046, 2
    %v1048 = vmax.f32 %v1046, %v1047
    %v1049 = vrot.slane %v1048, 1
    %v1050 = vmax.f32 %v1048, %v1049
    %vm1067 = vcmask 1041409
    %v1068 = vsel %vm1067, %v966, %v960
    %vm1069 = vcmask 1042434
    %v1070 = vsel %vm1069, %v972, %v1068
    %vm1071 = vcmask 1043459
    %v1072 = vsel %vm1071, %v978, %v1070
    %vm1073 = vcmask 1044484
    %v1074 = vsel %vm1073, %v984, %v1072
    %vm1075 = vcmask 1045509
    %v1076 = vsel %vm1075, %v990, %v1074
    %vm1077 = vcmask 1046534
    %v1078 = vsel %vm1077, %v996, %v1076
    %vm1079 = vcmask 1047559
    %v1080 = vsel %vm1079, %v1002, %v1078
    %v1081 = vsel %vm1067, %v1014, %v1008
    %v1082 = vsel %vm1069, %v1020, %v1081
    %v1083 = vsel %vm1071, %v1026, %v1082
    %v1084 = vsel %vm1073, %v1032, %v1083
    %v1085 = vsel %vm1075, %v1038, %v1084
    %v1086 = vsel %vm1077, %v1044, %v1085
    %v1087 = vsel %vm1079, %v1050, %v1086
    %1090 = vst [vmem:[#allocation2] sm:$0xff] %v1080
    %1091 = vst [vmem:[#allocation2 + $0x8] sm:$0xff] %v1087
    // Predicated region
    $region22: #{tpu_custom_call.1} parent=1 // pred_check
      _
    $region23: #{tpu_custom_call.1} parent=1 // pred_check_branch
      %1093 = sbr.rel (0) target = $region25
    $region24: #{tpu_custom_call.1} parent=1 // pred_region
      %s1095 = ssub.s32 256, 256
      %1096 = vsyncadd [#allocation3], %s1095
      %s1097 = sshll.u32 [#allocation2], 4
      %s1098 = int_to_ptr.vmem [resolvable:$true] %s1097
      %1103 = dma.vmem_to_hbm [thread:$0]  %s1098, 256, %s5, [#allocation3], 128, 128, 8
    $region25: #{tpu_custom_call.1} parent=1 // pred_fallthru
      _
    // Predicated region
    $region26: #{tpu_custom_call.1} parent=1 // pred_check
      _
    $region27: #{tpu_custom_call.1} parent=1 // pred_check_branch
      %1105 = sbr.rel (0) target = $region29
    $region28: #{tpu_custom_call.1} parent=1 // pred_region
      %1106 = dma.done [#allocation3], 256
    $region29: #{tpu_custom_call.1} parent=1 // pred_fallthru
      _
    %1107 = vsyncpa [#allocation3], 1

</llo_original>
